<compile_context>
chip_gen: v6e
topology: v6e:2x2x1
jax: 0.10.0
libtpu: 0.0.40
codegen_flags: <defaults>
</compile_context>

<pallas_src>
import jax
import jax.numpy as jnp
from jax.experimental import pallas as pl
from jax.experimental.pallas import tpu as pltpu

DIMENSION = 2            # state-space dimension of the particle (module's global DIMENSION)
EPS = 1.0                # args.eps used by PositiveLinear
TILE_LANE = 128          # lane width of a batch slab (fixed: one full vreg lane group)
MAX_SUBLANE = 256        # max sublanes per grid step -> up to 256*128 = 32768 batch rows/step
VMEM_LIMIT_BYTES = 32 * 1024 * 1024   # explicit scoped-VMEM limit (v5e default is only 16 MiB)

# ---- slot indices into the flattened weight / bias SMEM arrays (match _W_ORDER/_B_ORDER) ----
(W_L1, W_CIN, W_CIN_MID, W_XI, W_L2, W_P1, W_P1_MID, W_CL1, W_CL1_MID, W_XP1,
 W_L3, W_P2, W_P2_MID, W_CL2, W_CL2_MID, W_XP2, W_LO, W_PO, W_PO_MID, W_CLO,
 W_CLO_MID) = range(21)
(B_L1, B_CIN_MID, B_XI, B_L2, B_P1_MID, B_CL1_MID, B_XP1, B_L3, B_P2_MID,
 B_CL2_MID, B_XP2, B_LO, B_PO_MID, B_CLO_MID) = range(14)

_W_ORDER = [
    "x_lateral_layer_1", "conjugate_lateral_layer_in",
    "conjugate_lateral_layer_in_mid", "x_input_layer",
    "x_lateral_layer_2", "conjugate_prop_layer_1",
    "conjugate_prop_layer_1_mid", "conjugate_lateral_layer_1",
    "conjugate_lateral_layer_1_mid", "x_prop_layer1",
    "x_lateral_layer_3", "conjugate_prop_layer_2",
    "conjugate_prop_layer_2_mid", "conjugate_lateral_layer_2",
    "conjugate_lateral_layer_2_mid", "x_prop_layer2",
    "x_lateral_layer_out", "conjugate_prop_layer_out",
    "conjugate_prop_layer_out_mid", "conjugate_lateral_layer_out",
    "conjugate_lateral_layer_out_mid",
]
_B_ORDER = [
    "x_lateral_layer_1", "conjugate_lateral_layer_in_mid", "x_input_layer",
    "x_lateral_layer_2", "conjugate_prop_layer_1_mid",
    "conjugate_lateral_layer_1_mid", "x_prop_layer1", "x_lateral_layer_3",
    "conjugate_prop_layer_2_mid", "conjugate_lateral_layer_2_mid",
    "x_prop_layer2", "x_lateral_layer_out", "conjugate_prop_layer_out_mid",
    "conjugate_lateral_layer_out_mid",
]


def _softplus(z):
    # matches torch.nn.Softplus (beta=1, threshold=20)
    return jnp.where(z > 20.0, z, jnp.log1p(jnp.exp(jnp.minimum(z, 20.0))))


def gradient_dynamics_kernel(x_ref, w_ref, b_ref, o_ref):
    """PICNN forward + hand-derived reverse-mode grad w.r.t. x_star.

    x_ref / o_ref : (DIMENSION, S, 128) VMEM — feature d lives in slab x_ref[d];
                    each slab is pure batch data (full vreg utilization, VPU/EUP only).
    w_ref         : (21*9,)  f32 SMEM — W[slot][i, j] at slot*9 + i*3 + j  (out i, in j).
    b_ref         : (14*3,)  f32 SMEM — b[slot][i]    at slot*3 + i.
    """
    D = DIMENSION

    def w(slot, i, j):
        return w_ref[slot * 9 + i * 3 + j]

    def b(slot, i):
        return b_ref[slot * 3 + i]

    def lin(rows, wslot, out_d, bslot=None):
        # y_i = sum_j W[i, j] * rows[j]  (+ b_i)   — <= 9 scalar*slab FMAs
        in_d = len(rows)
        out = []
        for i in range(out_d):
            acc = rows[0] * w(wslot, i, 0)
            for j in range(1, in_d):
                acc = acc + rows[j] * w(wslot, i, j)
            if bslot is not None:
                acc = acc + b(bslot, i)
            out.append(acc)
        return out

    def lin_t(gout, wslot, in_d):
        # transpose-apply: g_in[j] = sum_i W[i, j] * gout[i]
        out_d = len(gout)
        res = []
        for j in range(in_d):
            acc = gout[0] * w(wslot, 0, j)
            for i in range(1, out_d):
                acc = acc + gout[i] * w(wslot, i, j)
            res.append(acc)
        return res

    def add(a, c):
        return [u + v for u, v in zip(a, c)]

    def mul(a, c):
        return [u * v for u, v in zip(a, c)]

    def sp(rows):
        return [_softplus(r) for r in rows]

    def sp_sig(rows):
        # Fused softplus + its derivative (sigmoid): ONE exp per row feeds both.
        #   t = exp(min(u, 20));  softplus = u if u>20 else log1p(t);  sigma = t/(1+t)
        # (for u>20, t = e^20 ≈ 4.85e8 so t/(1+t) rounds to 1.0 in f32 — matches sigmoid(u)).
        sps, sigs = [], []
        for r in rows:
            t = jnp.exp(jnp.minimum(r, 20.0))
            sps.append(jnp.where(r > 20.0, r, jnp.log1p(t)))
            sigs.append(t * pl.reciprocal(1.0 + t, approx=False))
        return sps, sigs

    def sig_only(rows):
        out = []
        for r in rows:
            t = jnp.exp(jnp.minimum(r, 20.0))
            out.append(t * pl.reciprocal(1.0 + t, approx=False))
        return out

    x0 = [x_ref[d] for d in range(D)]       # each (S, 128)
    x0s = [-r for r in x0]                  # conjugate(x)

    # ---------------- forward (DissipationNetwork) ----------------
    m_in = lin(x0, W_CIN_MID, D, B_CIN_MID)
    u_in = add(lin(x0, W_L1, 3, B_L1), lin(mul(x0s, m_in), W_CIN, 3))
    xs1, sig_in = sp_sig(u_in)              # softplus value + stashed derivative
    x1 = sp(lin(x0, W_XI, 3, B_XI))

    p1 = sp(lin(x1, W_P1_MID, 3, B_P1_MID))
    m1 = lin(x1, W_CL1_MID, D, B_CL1_MID)
    u1 = add(add(lin(x1, W_L2, 3, B_L2), lin(mul(xs1, p1), W_P1, 3)),
             lin(mul(x0s, m1), W_CL1, 3))
    xs2, sig_1 = sp_sig(u1)
    x2 = sp(lin(x1, W_XP1, 3, B_XP1))

    p2 = sp(lin(x2, W_P2_MID, 3, B_P2_MID))
    m2 = lin(x2, W_CL2_MID, D, B_CL2_MID)
    u2 = add(add(lin(x2, W_L3, 3, B_L3), lin(mul(xs2, p2), W_P2, 3)),
             lin(mul(x0s, m2), W_CL2, 3))
    xs3, sig_2 = sp_sig(u2)
    x3 = sp(lin(x2, W_XP2, 3, B_XP2))

    p_out = sp(lin(x3, W_PO_MID, 3, B_PO_MID))
    m_out = lin(x3, W_CLO_MID, D, B_CLO_MID)
    u_out = add(add(lin(x3, W_LO, 1, B_LO), lin(mul(xs3, p_out), W_PO, 1)),
                lin(mul(x0s, m_out), W_CLO, 1))
    # Psi = softplus(u_out) — only its gradient w.r.t. x_star is returned.

    # ------------- manual reverse-mode: x_dot = dPsi/dx_star -------------
    g_uout = sig_only(u_out)                              # grad_outputs = ones
    grad = mul(lin_t(g_uout, W_CLO, D), m_out)            # direct lateral-out path
    g_xs3 = mul(lin_t(g_uout, W_PO, 3), p_out)
    g_u2 = mul(g_xs3, sig_2)
    grad = add(grad, mul(lin_t(g_u2, W_CL2, D), m2))
    g_xs2 = mul(lin_t(g_u2, W_P2, 3), p2)
    g_u1 = mul(g_xs2, sig_1)
    grad = add(grad, mul(lin_t(g_u1, W_CL1, D), m1))
    g_xs1 = mul(lin_t(g_u1, W_P1, 3), p1)
    g_uin = mul(g_xs1, sig_in)
    grad = add(grad, mul(lin_t(g_uin, W_CIN, D), m_in))

    for d in range(D):
        o_ref[d] = grad[d]


# ---------------------------- pallas_call wrappers ----------------------------
def gradient_dynamics_packed(xp, w_flat, b_flat, *, block_sublane=None,
                             max_sublane=MAX_SUBLANE):
    """Packed-layout entry point: xp (D, S_total, 128) f32 -> x_dot in the same layout.

    Use this directly inside integrator loops to avoid the wrapper's pad/transpose HBM passes.
    """
    D, total_sub, lane = xp.shape
    assert D == DIMENSION
    assert lane % 128 == 0 and total_sub % 8 == 0
    if block_sublane is None:
        # biggest divisor of total_sub (multiple of 8, <= max_sublane), preferring >=2 tiles
        cap = total_sub if total_sub < 16 else max(8, total_sub // 2)
        cap = max(8, (min(max_sublane, cap) // 8) * 8)
        block_sublane = 8
        for cand in range(cap, 7, -8):
            if total_sub % cand == 0:
                block_sublane = cand
                break
    assert block_sublane % 8 == 0 and total_sub % block_sublane == 0
    grid_tiles = total_sub // block_sublane

    return pl.pallas_call(
        gradient_dynamics_kernel,
        out_shape=jax.ShapeDtypeStruct((D, total_sub, lane), jnp.float32),
        grid=(grid_tiles,),
        in_specs=[
            pl.BlockSpec((D, block_sublane, lane), lambda t: (0, t, 0)),
            pl.BlockSpec(memory_space=pltpu.MemorySpace.SMEM),   # scalar weights, resident
            pl.BlockSpec(memory_space=pltpu.MemorySpace.SMEM),   # scalar biases, resident
        ],
        out_specs=pl.BlockSpec((D, block_sublane, lane), lambda t: (0, t, 0)),
        compiler_params=pltpu.CompilerParams(
            dimension_semantics=("parallel",),        # megacore / v7x 2-TC split over tiles
            vmem_limit_bytes=VMEM_LIMIT_BYTES,        # explicit: v5e scoped default is 16 MiB
        ),
    )(xp.astype(jnp.float32), w_flat, b_flat)


def _tile_plan(batch, tile_lane, max_sublane):
    """Static (python-int) tiling: sublanes per block and number of grid tiles."""
    sub = -(-batch // tile_lane)                     # sublanes needed
    sub = max(8, ((sub + 7) // 8) * 8)               # round to a multiple of 8
    min_tiles = 2 if sub >= 16 else 1                # keep both v7x TCs busy when possible
    tiles = max(min_tiles, -(-sub // max_sublane))
    s = ((-(-sub // tiles) + 7) // 8) * 8
    tiles = -(-sub // s)
    return s, tiles


def gradient_dynamics(x, w_flat, b_flat, *, tile_lane=TILE_LANE,
                      max_sublane=MAX_SUBLANE):
    """x: (B, DIMENSION) -> x_dot: (B, DIMENSION). Convenience wrapper (pads + relayouts)."""
    x = x.astype(jnp.float32)
    B, D = x.shape
    assert D == DIMENSION
    s, tiles = _tile_plan(B, tile_lane, max_sublane)
    total_sub = s * tiles
    b_pad = total_sub * tile_lane

    # Re-layout: (B, D) -> (D, total_sub, tile_lane); batch fills (sublane, lane).
    xp = jnp.zeros((b_pad, D), jnp.float32).at[:B].set(x)
    xp = xp.T.reshape(D, total_sub, tile_lane)

    out = gradient_dynamics_packed(xp, w_flat, b_flat,
                                   block_sublane=s, max_sublane=max_sublane)
    return out.reshape(D, b_pad).T[:B]


gradient_dynamics_jit = jax.jit(gradient_dynamics,
                                static_argnames=("tile_lane", "max_sublane"))
gradient_dynamics_packed_jit = jax.jit(gradient_dynamics_packed,
                                       static_argnames=("block_sublane", "max_sublane"))


# ---------------------------- parameter setup (plain JAX glue) ----------------------------
def init_params(key):
    D = DIMENSION
    layer_defs = [
        # (name, out_dim, in_dim, has_bias, is_positive_linear)
        ("x_input_layer", 3, D, True, False),
        ("x_prop_layer1", 3, 3, True, False),
        ("x_prop_layer2", 3, 3, True, False),
        ("x_lateral_layer_1", 3, D, True, False),
        ("x_lateral_layer_2", 3, 3, True, False),
        ("x_lateral_layer_3", 3, 3, True, False),
        ("x_lateral_layer_out", 1, 3, True, False),
        ("conjugate_prop_layer_1", 3, 3, False, True),
        ("conjugate_prop_layer_2", 3, 3, False, True),
        ("conjugate_prop_layer_out", 1, 3, False, True),
        ("conjugate_prop_layer_1_mid", 3, 3, True, False),
        ("conjugate_prop_layer_2_mid", 3, 3, True, False),
        ("conjugate_prop_layer_out_mid", 3, 3, True, False),
        ("conjugate_lateral_layer_in", 3, D, False, False),
        ("conjugate_lateral_layer_1", 3, D, False, False),
        ("conjugate_lateral_layer_2", 3, D, False, False),
        ("conjugate_lateral_layer_out", 1, D, False, False),
        ("conjugate_lateral_layer_in_mid", D, D, True, False),
        ("conjugate_lateral_layer_1_mid", D, 3, True, False),
        ("conjugate_lateral_layer_2_mid", D, 3, True, False),
        ("conjugate_lateral_layer_out_mid", D, 3, True, False),
    ]
    keys = jax.random.split(key, len(layer_defs))
    params = {}
    for k, (name, out_d, in_d, has_bias, positive) in zip(keys, layer_defs):
        # kaiming_normal_-like init (fan_in, gain sqrt(2)), biases zero — deterministic synthetic init
        wm = jax.random.normal(k, (out_d, in_d), jnp.float32) * jnp.sqrt(2.0 / in_d)
        if positive:
            # PositiveLinear forward-time reparameterization, folded into the params
            wm = jnp.where(wm >= 0, wm + jnp.exp(jnp.float32(-EPS)),
                           jnp.exp(wm - jnp.float32(EPS)))
        params[name] = {"w": wm}
        if has_bias:
            params[name]["b"] = jnp.zeros((out_d,), jnp.float32)
    return params


def pack_params(params):
    """Flatten all weights/biases into tiny SMEM-friendly 1-D f32 arrays (done once)."""
    w_rows = []
    for name in _W_ORDER:
        wm = params[name]["w"]
        wp = jnp.zeros((3, 3), jnp.float32).at[: wm.shape[0], : wm.shape[1]].set(wm)
        w_rows.append(wp.reshape(-1))
    w_flat = jnp.concatenate(w_rows)                       # (21*9,) = (189,)
    b_rows = []
    for name in _B_ORDER:
        bb = params[name]["b"]
        bp = jnp.zeros((3,), jnp.float32).at[: bb.shape[0]].set(bb)
        b_rows.append(bp)
    b_flat = jnp.concatenate(b_rows)                       # (14*3,) = (42,)
    return w_flat, b_flat


# ---------------------------- pure-JAX reference (for verification) ----------------------------
def _dissipation_ref(params, x0, x0s):
    sp = jax.nn.softplus

    def lin(name, v):
        p = params[name]
        y = v @ p["w"].T
        if "b" in p:
            y = y + p["b"]
        return y

    xs1 = sp(lin("x_lateral_layer_1", x0)
             + lin("conjugate_lateral_layer_in",
                   x0s * lin("conjugate_lateral_layer_in_mid", x0)))
    x1 = sp(lin("x_input_layer", x0))
    xs2 = sp(lin("x_lateral_layer_2", x1)
             + lin("conjugate_prop_layer_1",
                   xs1 * sp(lin("conjugate_prop_layer_1_mid", x1)))
             + lin("conjugate_lateral_layer_1",
                   x0s * lin("conjugate_lateral_layer_1_mid", x1)))
    x2 = sp(lin("x_prop_layer1", x1))
    xs3 = sp(lin("x_lateral_layer_3", x2)
             + lin("conjugate_prop_layer_2",
                   xs2 * sp(lin("conjugate_prop_layer_2_mid", x2)))
             + lin("conjugate_lateral_layer_2",
                   x0s * lin("conjugate_lateral_layer_2_mid", x2)))
    x3 = sp(lin("x_prop_layer2", x2))
    out = sp(lin("x_lateral_layer_out", x3)
             + lin("conjugate_prop_layer_out",
                   xs3 * sp(lin("conjugate_prop_layer_out_mid", x3)))
             + lin("conjugate_lateral_layer_out",
                   x0s * lin("conjugate_lateral_layer_out_mid", x3)))
    return out


def gradient_dynamics_ref(params, x):
    x = x.astype(jnp.float32)
    x_star = -x
    return jax.grad(lambda s: _dissipation_ref(params, x, s).sum())(x_star)


if __name__ == "__main__":
    key = jax.random.PRNGKey(0)
    pkey, xkey = jax.random.split(key)
    params = init_params(pkey)
    w_flat, b_flat = pack_params(params)          # packed once, outside the per-call path

    # B=8: single tiny tile; B=2500: two grid tiles (v7x megacore path);
    # B=40000: larger (160-sublane) blocks exercising the enlarged-block path.
    for B in (8, 2500, 40000):
        x = jax.random.normal(jax.random.fold_in(xkey, B), (B, DIMENSION), jnp.float32)
        x_dot = jax.block_until_ready(gradient_dynamics_jit(x, w_flat, b_flat))
        ref = gradient_dynamics_ref(params, x)
        assert x_dot.shape == (B, DIMENSION)
        if not jnp.allclose(x_dot, ref, rtol=1e-4, atol=1e-5):
            raise AssertionError(
                f"mismatch at B={B}: max err {jnp.max(jnp.abs(x_dot - ref))}")
    print("KERNEL_OK")
</pallas_src>

<mosaic_0001>
module attributes {stable_mosaic.version = 11 : i64} {
  func.func @gradient_dynamics_kernel(%arg0: i32, %arg1: memref<2x8x128xf32, #tpu.memory_space<vmem>>, %arg2: memref<189xf32, #tpu.memory_space<smem>>, %arg3: memref<42xf32, #tpu.memory_space<smem>>, %arg4: memref<2x8x128xf32, #tpu.memory_space<vmem>>) attributes {dimension_semantics = [#tpu.dimension_semantics<parallel>], iteration_bounds = array<i64: 1>, scalar_prefetch = 0 : i64, scratch_operands = 0 : i64, tpu.core_type = #tpu.core_type<tc>, window_params = [{transform_indices = @transform_0, window_bounds = array<i64: 2, 8, 128>}, {transform_indices = @transform_1, window_bounds = array<i64: 189>}, {transform_indices = @transform_2, window_bounds = array<i64: 42>}, {transform_indices = @transform_3, window_bounds = array<i64: 2, 8, 128>}]} {
    %c0 = arith.constant 0 : index
    %c0_0 = arith.constant 0 : index
    %c0_1 = arith.constant 0 : index
    %0 = vector.load %arg1[%c0, %c0_0, %c0_1] : memref<2x8x128xf32, #tpu.memory_space<vmem>>, vector<1x8x128xf32>
    %1 = vector.shape_cast %0 : vector<1x8x128xf32> to vector<8x128xf32>
    %c1 = arith.constant 1 : index
    %c0_2 = arith.constant 0 : index
    %c0_3 = arith.constant 0 : index
    %2 = vector.load %arg1[%c1, %c0_2, %c0_3] : memref<2x8x128xf32, #tpu.memory_space<vmem>>, vector<1x8x128xf32>
    %3 = vector.shape_cast %2 : vector<1x8x128xf32> to vector<8x128xf32>
    %cst = arith.constant 0.000000e+00 : f32
    %4 = vector.broadcast %cst : f32 to vector<8x128xf32>
    %5 = arith.subf %4, %1 : vector<8x128xf32>
    %cst_4 = arith.constant 0.000000e+00 : f32
    %6 = vector.broadcast %cst_4 : f32 to vector<8x128xf32>
    %7 = arith.subf %6, %3 : vector<8x128xf32>
    %c18 = arith.constant 18 : index
    %8 = memref.load %arg2[%c18] : memref<189xf32, #tpu.memory_space<smem>>
    %9 = vector.broadcast %8 : f32 to vector<8x128xf32>
    %10 = arith.mulf %1, %9 : vector<8x128xf32>
    %c19 = arith.constant 19 : index
    %11 = memref.load %arg2[%c19] : memref<189xf32, #tpu.memory_space<smem>>
    %12 = vector.broadcast %11 : f32 to vector<8x128xf32>
    %13 = arith.mulf %3, %12 : vector<8x128xf32>
    %14 = arith.addf %10, %13 : vector<8x128xf32>
    %c3 = arith.constant 3 : index
    %15 = memref.load %arg3[%c3] : memref<42xf32, #tpu.memory_space<smem>>
    %16 = vector.broadcast %15 : f32 to vector<8x128xf32>
    %17 = arith.addf %14, %16 : vector<8x128xf32>
    %c21 = arith.constant 21 : index
    %18 = memref.load %arg2[%c21] : memref<189xf32, #tpu.memory_space<smem>>
    %19 = vector.broadcast %18 : f32 to vector<8x128xf32>
    %20 = arith.mulf %1, %19 : vector<8x128xf32>
    %c22 = arith.constant 22 : index
    %21 = memref.load %arg2[%c22] : memref<189xf32, #tpu.memory_space<smem>>
    %22 = vector.broadcast %21 : f32 to vector<8x128xf32>
    %23 = arith.mulf %3, %22 : vector<8x128xf32>
    %24 = arith.addf %20, %23 : vector<8x128xf32>
    %c4 = arith.constant 4 : index
    %25 = memref.load %arg3[%c4] : memref<42xf32, #tpu.memory_space<smem>>
    %26 = vector.broadcast %25 : f32 to vector<8x128xf32>
    %27 = arith.addf %24, %26 : vector<8x128xf32>
    %c0_5 = arith.constant 0 : index
    %28 = memref.load %arg2[%c0_5] : memref<189xf32, #tpu.memory_space<smem>>
    %29 = vector.broadcast %28 : f32 to vector<8x128xf32>
    %30 = arith.mulf %1, %29 : vector<8x128xf32>
    %c1_6 = arith.constant 1 : index
    %31 = memref.load %arg2[%c1_6] : memref<189xf32, #tpu.memory_space<smem>>
    %32 = vector.broadcast %31 : f32 to vector<8x128xf32>
    %33 = arith.mulf %3, %32 : vector<8x128xf32>
    %34 = arith.addf %30, %33 : vector<8x128xf32>
    %c0_7 = arith.constant 0 : index
    %35 = memref.load %arg3[%c0_7] : memref<42xf32, #tpu.memory_space<smem>>
    %36 = vector.broadcast %35 : f32 to vector<8x128xf32>
    %37 = arith.addf %34, %36 : vector<8x128xf32>
    %c3_8 = arith.constant 3 : index
    %38 = memref.load %arg2[%c3_8] : memref<189xf32, #tpu.memory_space<smem>>
    %39 = vector.broadcast %38 : f32 to vector<8x128xf32>
    %40 = arith.mulf %1, %39 : vector<8x128xf32>
    %c4_9 = arith.constant 4 : index
    %41 = memref.load %arg2[%c4_9] : memref<189xf32, #tpu.memory_space<smem>>
    %42 = vector.broadcast %41 : f32 to vector<8x128xf32>
    %43 = arith.mulf %3, %42 : vector<8x128xf32>
    %44 = arith.addf %40, %43 : vector<8x128xf32>
    %c1_10 = arith.constant 1 : index
    %45 = memref.load %arg3[%c1_10] : memref<42xf32, #tpu.memory_space<smem>>
    %46 = vector.broadcast %45 : f32 to vector<8x128xf32>
    %47 = arith.addf %44, %46 : vector<8x128xf32>
    %c6 = arith.constant 6 : index
    %48 = memref.load %arg2[%c6] : memref<189xf32, #tpu.memory_space<smem>>
    %49 = vector.broadcast %48 : f32 to vector<8x128xf32>
    %50 = arith.mulf %1, %49 : vector<8x128xf32>
    %c7 = arith.constant 7 : index
    %51 = memref.load %arg2[%c7] : memref<189xf32, #tpu.memory_space<smem>>
    %52 = vector.broadcast %51 : f32 to vector<8x128xf32>
    %53 = arith.mulf %3, %52 : vector<8x128xf32>
    %54 = arith.addf %50, %53 : vector<8x128xf32>
    %c2 = arith.constant 2 : index
    %55 = memref.load %arg3[%c2] : memref<42xf32, #tpu.memory_space<smem>>
    %56 = vector.broadcast %55 : f32 to vector<8x128xf32>
    %57 = arith.addf %54, %56 : vector<8x128xf32>
    %58 = arith.mulf %5, %17 : vector<8x128xf32>
    %59 = arith.mulf %7, %27 : vector<8x128xf32>
    %c9 = arith.constant 9 : index
    %60 = memref.load %arg2[%c9] : memref<189xf32, #tpu.memory_space<smem>>
    %61 = vector.broadcast %60 : f32 to vector<8x128xf32>
    %62 = arith.mulf %58, %61 : vector<8x128xf32>
    %c10 = arith.constant 10 : index
    %63 = memref.load %arg2[%c10] : memref<189xf32, #tpu.memory_space<smem>>
    %64 = vector.broadcast %63 : f32 to vector<8x128xf32>
    %65 = arith.mulf %59, %64 : vector<8x128xf32>
    %66 = arith.addf %62, %65 : vector<8x128xf32>
    %c12 = arith.constant 12 : index
    %67 = memref.load %arg2[%c12] : memref<189xf32, #tpu.memory_space<smem>>
    %68 = vector.broadcast %67 : f32 to vector<8x128xf32>
    %69 = arith.mulf %58, %68 : vector<8x128xf32>
    %c13 = arith.constant 13 : index
    %70 = memref.load %arg2[%c13] : memref<189xf32, #tpu.memory_space<smem>>
    %71 = vector.broadcast %70 : f32 to vector<8x128xf32>
    %72 = arith.mulf %59, %71 : vector<8x128xf32>
    %73 = arith.addf %69, %72 : vector<8x128xf32>
    %c15 = arith.constant 15 : index
    %74 = memref.load %arg2[%c15] : memref<189xf32, #tpu.memory_space<smem>>
    %75 = vector.broadcast %74 : f32 to vector<8x128xf32>
    %76 = arith.mulf %58, %75 : vector<8x128xf32>
    %c16 = arith.constant 16 : index
    %77 = memref.load %arg2[%c16] : memref<189xf32, #tpu.memory_space<smem>>
    %78 = vector.broadcast %77 : f32 to vector<8x128xf32>
    %79 = arith.mulf %59, %78 : vector<8x128xf32>
    %80 = arith.addf %76, %79 : vector<8x128xf32>
    %81 = arith.addf %37, %66 : vector<8x128xf32>
    %82 = arith.addf %47, %73 : vector<8x128xf32>
    %83 = arith.addf %57, %80 : vector<8x128xf32>
    %cst_11 = arith.constant 2.000000e+01 : f32
    %84 = vector.broadcast %cst_11 : f32 to vector<8x128xf32>
    %85 = arith.minimumf %81, %84 : vector<8x128xf32>
    %86 = math.exp %85 : vector<8x128xf32>
    %cst_12 = arith.constant 2.000000e+01 : f32
    %87 = vector.broadcast %cst_12 : f32 to vector<8x128xf32>
    %88 = arith.cmpf ogt, %81, %87 : vector<8x128xf32>
    %89 = math.log1p %86 : vector<8x128xf32>
    %90 = arith.select %88, %81, %89 : vector<8x128xi1>, vector<8x128xf32>
    %cst_13 = arith.constant 1.000000e+00 : f32
    %91 = vector.broadcast %cst_13 : f32 to vector<8x128xf32>
    %92 = arith.addf %91, %86 : vector<8x128xf32>
    %93 = tpu.reciprocal %92 : vector<8x128xf32> -> vector<8x128xf32>
    %94 = arith.mulf %86, %93 : vector<8x128xf32>
    %cst_14 = arith.constant 2.000000e+01 : f32
    %95 = vector.broadcast %cst_14 : f32 to vector<8x128xf32>
    %96 = arith.minimumf %82, %95 : vector<8x128xf32>
    %97 = math.exp %96 : vector<8x128xf32>
    %cst_15 = arith.constant 2.000000e+01 : f32
    %98 = vector.broadcast %cst_15 : f32 to vector<8x128xf32>
    %99 = arith.cmpf ogt, %82, %98 : vector<8x128xf32>
    %100 = math.log1p %97 : vector<8x128xf32>
    %101 = arith.select %99, %82, %100 : vector<8x128xi1>, vector<8x128xf32>
    %cst_16 = arith.constant 1.000000e+00 : f32
    %102 = vector.broadcast %cst_16 : f32 to vector<8x128xf32>
    %103 = arith.addf %102, %97 : vector<8x128xf32>
    %104 = tpu.reciprocal %103 : vector<8x128xf32> -> vector<8x128xf32>
    %105 = arith.mulf %97, %104 : vector<8x128xf32>
    %cst_17 = arith.constant 2.000000e+01 : f32
    %106 = vector.broadcast %cst_17 : f32 to vector<8x128xf32>
    %107 = arith.minimumf %83, %106 : vector<8x128xf32>
    %108 = math.exp %107 : vector<8x128xf32>
    %cst_18 = arith.constant 2.000000e+01 : f32
    %109 = vector.broadcast %cst_18 : f32 to vector<8x128xf32>
    %110 = arith.cmpf ogt, %83, %109 : vector<8x128xf32>
    %111 = math.log1p %108 : vector<8x128xf32>
    %112 = arith.select %110, %83, %111 : vector<8x128xi1>, vector<8x128xf32>
    %cst_19 = arith.constant 1.000000e+00 : f32
    %113 = vector.broadcast %cst_19 : f32 to vector<8x128xf32>
    %114 = arith.addf %113, %108 : vector<8x128xf32>
    %115 = tpu.reciprocal %114 : vector<8x128xf32> -> vector<8x128xf32>
    %116 = arith.mulf %108, %115 : vector<8x128xf32>
    %c27 = arith.constant 27 : index
    %117 = memref.load %arg2[%c27] : memref<189xf32, #tpu.memory_space<smem>>
    %118 = vector.broadcast %117 : f32 to vector<8x128xf32>
    %119 = arith.mulf %1, %118 : vector<8x128xf32>
    %c28 = arith.constant 28 : index
    %120 = memref.load %arg2[%c28] : memref<189xf32, #tpu.memory_space<smem>>
    %121 = vector.broadcast %120 : f32 to vector<8x128xf32>
    %122 = arith.mulf %3, %121 : vector<8x128xf32>
    %123 = arith.addf %119, %122 : vector<8x128xf32>
    %c6_20 = arith.constant 6 : index
    %124 = memref.load %arg3[%c6_20] : memref<42xf32, #tpu.memory_space<smem>>
    %125 = vector.broadcast %124 : f32 to vector<8x128xf32>
    %126 = arith.addf %123, %125 : vector<8x128xf32>
    %c30 = arith.constant 30 : index
    %127 = memref.load %arg2[%c30] : memref<189xf32, #tpu.memory_space<smem>>
    %128 = vector.broadcast %127 : f32 to vector<8x128xf32>
    %129 = arith.mulf %1, %128 : vector<8x128xf32>
    %c31 = arith.constant 31 : index
    %130 = memref.load %arg2[%c31] : memref<189xf32, #tpu.memory_space<smem>>
    %131 = vector.broadcast %130 : f32 to vector<8x128xf32>
    %132 = arith.mulf %3, %131 : vector<8x128xf32>
    %133 = arith.addf %129, %132 : vector<8x128xf32>
    %c7_21 = arith.constant 7 : index
    %134 = memref.load %arg3[%c7_21] : memref<42xf32, #tpu.memory_space<smem>>
    %135 = vector.broadcast %134 : f32 to vector<8x128xf32>
    %136 = arith.addf %133, %135 : vector<8x128xf32>
    %c33 = arith.constant 33 : index
    %137 = memref.load %arg2[%c33] : memref<189xf32, #tpu.memory_space<smem>>
    %138 = vector.broadcast %137 : f32 to vector<8x128xf32>
    %139 = arith.mulf %1, %138 : vector<8x128xf32>
    %c34 = arith.constant 34 : index
    %140 = memref.load %arg2[%c34] : memref<189xf32, #tpu.memory_space<smem>>
    %141 = vector.broadcast %140 : f32 to vector<8x128xf32>
    %142 = arith.mulf %3, %141 : vector<8x128xf32>
    %143 = arith.addf %139, %142 : vector<8x128xf32>
    %c8 = arith.constant 8 : index
    %144 = memref.load %arg3[%c8] : memref<42xf32, #tpu.memory_space<smem>>
    %145 = vector.broadcast %144 : f32 to vector<8x128xf32>
    %146 = arith.addf %143, %145 : vector<8x128xf32>
    %cst_22 = arith.constant 2.000000e+01 : f32
    %147 = vector.broadcast %cst_22 : f32 to vector<8x128xf32>
    %148 = arith.cmpf ogt, %126, %147 : vector<8x128xf32>
    %cst_23 = arith.constant 2.000000e+01 : f32
    %149 = vector.broadcast %cst_23 : f32 to vector<8x128xf32>
    %150 = arith.minimumf %126, %149 : vector<8x128xf32>
    %151 = math.exp %150 : vector<8x128xf32>
    %152 = math.log1p %151 : vector<8x128xf32>
    %153 = arith.select %148, %126, %152 : vector<8x128xi1>, vector<8x128xf32>
    %cst_24 = arith.constant 2.000000e+01 : f32
    %154 = vector.broadcast %cst_24 : f32 to vector<8x128xf32>
    %155 = arith.cmpf ogt, %136, %154 : vector<8x128xf32>
    %cst_25 = arith.constant 2.000000e+01 : f32
    %156 = vector.broadcast %cst_25 : f32 to vector<8x128xf32>
    %157 = arith.minimumf %136, %156 : vector<8x128xf32>
    %158 = math.exp %157 : vector<8x128xf32>
    %159 = math.log1p %158 : vector<8x128xf32>
    %160 = arith.select %155, %136, %159 : vector<8x128xi1>, vector<8x128xf32>
    %cst_26 = arith.constant 2.000000e+01 : f32
    %161 = vector.broadcast %cst_26 : f32 to vector<8x128xf32>
    %162 = arith.cmpf ogt, %146, %161 : vector<8x128xf32>
    %cst_27 = arith.constant 2.000000e+01 : f32
    %163 = vector.broadcast %cst_27 : f32 to vector<8x128xf32>
    %164 = arith.minimumf %146, %163 : vector<8x128xf32>
    %165 = math.exp %164 : vector<8x128xf32>
    %166 = math.log1p %165 : vector<8x128xf32>
    %167 = arith.select %162, %146, %166 : vector<8x128xi1>, vector<8x128xf32>
    %c54 = arith.constant 54 : index
    %168 = memref.load %arg2[%c54] : memref<189xf32, #tpu.memory_space<smem>>
    %169 = vector.broadcast %168 : f32 to vector<8x128xf32>
    %170 = arith.mulf %153, %169 : vector<8x128xf32>
    %c55 = arith.constant 55 : index
    %171 = memref.load %arg2[%c55] : memref<189xf32, #tpu.memory_space<smem>>
    %172 = vector.broadcast %171 : f32 to vector<8x128xf32>
    %173 = arith.mulf %160, %172 : vector<8x128xf32>
    %174 = arith.addf %170, %173 : vector<8x128xf32>
    %c56 = arith.constant 56 : index
    %175 = memref.load %arg2[%c56] : memref<189xf32, #tpu.memory_space<smem>>
    %176 = vector.broadcast %175 : f32 to vector<8x128xf32>
    %177 = arith.mulf %167, %176 : vector<8x128xf32>
    %178 = arith.addf %174, %177 : vector<8x128xf32>
    %c12_28 = arith.constant 12 : index
    %179 = memref.load %arg3[%c12_28] : memref<42xf32, #tpu.memory_space<smem>>
    %180 = vector.broadcast %179 : f32 to vector<8x128xf32>
    %181 = arith.addf %178, %180 : vector<8x128xf32>
    %c57 = arith.constant 57 : index
    %182 = memref.load %arg2[%c57] : memref<189xf32, #tpu.memory_space<smem>>
    %183 = vector.broadcast %182 : f32 to vector<8x128xf32>
    %184 = arith.mulf %153, %183 : vector<8x128xf32>
    %c58 = arith.constant 58 : index
    %185 = memref.load %arg2[%c58] : memref<189xf32, #tpu.memory_space<smem>>
    %186 = vector.broadcast %185 : f32 to vector<8x128xf32>
    %187 = arith.mulf %160, %186 : vector<8x128xf32>
    %188 = arith.addf %184, %187 : vector<8x128xf32>
    %c59 = arith.constant 59 : index
    %189 = memref.load %arg2[%c59] : memref<189xf32, #tpu.memory_space<smem>>
    %190 = vector.broadcast %189 : f32 to vector<8x128xf32>
    %191 = arith.mulf %167, %190 : vector<8x128xf32>
    %192 = arith.addf %188, %191 : vector<8x128xf32>
    %c13_29 = arith.constant 13 : index
    %193 = memref.load %arg3[%c13_29] : memref<42xf32, #tpu.memory_space<smem>>
    %194 = vector.broadcast %193 : f32 to vector<8x128xf32>
    %195 = arith.addf %192, %194 : vector<8x128xf32>
    %c60 = arith.constant 60 : index
    %196 = memref.load %arg2[%c60] : memref<189xf32, #tpu.memory_space<smem>>
    %197 = vector.broadcast %196 : f32 to vector<8x128xf32>
    %198 = arith.mulf %153, %197 : vector<8x128xf32>
    %c61 = arith.constant 61 : index
    %199 = memref.load %arg2[%c61] : memref<189xf32, #tpu.memory_space<smem>>
    %200 = vector.broadcast %199 : f32 to vector<8x128xf32>
    %201 = arith.mulf %160, %200 : vector<8x128xf32>
    %202 = arith.addf %198, %201 : vector<8x128xf32>
    %c62 = arith.constant 62 : index
    %203 = memref.load %arg2[%c62] : memref<189xf32, #tpu.memory_space<smem>>
    %204 = vector.broadcast %203 : f32 to vector<8x128xf32>
    %205 = arith.mulf %167, %204 : vector<8x128xf32>
    %206 = arith.addf %202, %205 : vector<8x128xf32>
    %c14 = arith.constant 14 : index
    %207 = memref.load %arg3[%c14] : memref<42xf32, #tpu.memory_space<smem>>
    %208 = vector.broadcast %207 : f32 to vector<8x128xf32>
    %209 = arith.addf %206, %208 : vector<8x128xf32>
    %cst_30 = arith.constant 2.000000e+01 : f32
    %210 = vector.broadcast %cst_30 : f32 to vector<8x128xf32>
    %211 = arith.cmpf ogt, %181, %210 : vector<8x128xf32>
    %cst_31 = arith.constant 2.000000e+01 : f32
    %212 = vector.broadcast %cst_31 : f32 to vector<8x128xf32>
    %213 = arith.minimumf %181, %212 : vector<8x128xf32>
    %214 = math.exp %213 : vector<8x128xf32>
    %215 = math.log1p %214 : vector<8x128xf32>
    %216 = arith.select %211, %181, %215 : vector<8x128xi1>, vector<8x128xf32>
    %cst_32 = arith.constant 2.000000e+01 : f32
    %217 = vector.broadcast %cst_32 : f32 to vector<8x128xf32>
    %218 = arith.cmpf ogt, %195, %217 : vector<8x128xf32>
    %cst_33 = arith.constant 2.000000e+01 : f32
    %219 = vector.broadcast %cst_33 : f32 to vector<8x128xf32>
    %220 = arith.minimumf %195, %219 : vector<8x128xf32>
    %221 = math.exp %220 : vector<8x128xf32>
    %222 = math.log1p %221 : vector<8x128xf32>
    %223 = arith.select %218, %195, %222 : vector<8x128xi1>, vector<8x128xf32>
    %cst_34 = arith.constant 2.000000e+01 : f32
    %224 = vector.broadcast %cst_34 : f32 to vector<8x128xf32>
    %225 = arith.cmpf ogt, %209, %224 : vector<8x128xf32>
    %cst_35 = arith.constant 2.000000e+01 : f32
    %226 = vector.broadcast %cst_35 : f32 to vector<8x128xf32>
    %227 = arith.minimumf %209, %226 : vector<8x128xf32>
    %228 = math.exp %227 : vector<8x128xf32>
    %229 = math.log1p %228 : vector<8x128xf32>
    %230 = arith.select %225, %209, %229 : vector<8x128xi1>, vector<8x128xf32>
    %c72 = arith.constant 72 : index
    %231 = memref.load %arg2[%c72] : memref<189xf32, #tpu.memory_space<smem>>
    %232 = vector.broadcast %231 : f32 to vector<8x128xf32>
    %233 = arith.mulf %153, %232 : vector<8x128xf32>
    %c73 = arith.constant 73 : index
    %234 = memref.load %arg2[%c73] : memref<189xf32, #tpu.memory_space<smem>>
    %235 = vector.broadcast %234 : f32 to vector<8x128xf32>
    %236 = arith.mulf %160, %235 : vector<8x128xf32>
    %237 = arith.addf %233, %236 : vector<8x128xf32>
    %c74 = arith.constant 74 : index
    %238 = memref.load %arg2[%c74] : memref<189xf32, #tpu.memory_space<smem>>
    %239 = vector.broadcast %238 : f32 to vector<8x128xf32>
    %240 = arith.mulf %167, %239 : vector<8x128xf32>
    %241 = arith.addf %237, %240 : vector<8x128xf32>
    %c15_36 = arith.constant 15 : index
    %242 = memref.load %arg3[%c15_36] : memref<42xf32, #tpu.memory_space<smem>>
    %243 = vector.broadcast %242 : f32 to vector<8x128xf32>
    %244 = arith.addf %241, %243 : vector<8x128xf32>
    %c75 = arith.constant 75 : index
    %245 = memref.load %arg2[%c75] : memref<189xf32, #tpu.memory_space<smem>>
    %246 = vector.broadcast %245 : f32 to vector<8x128xf32>
    %247 = arith.mulf %153, %246 : vector<8x128xf32>
    %c76 = arith.constant 76 : index
    %248 = memref.load %arg2[%c76] : memref<189xf32, #tpu.memory_space<smem>>
    %249 = vector.broadcast %248 : f32 to vector<8x128xf32>
    %250 = arith.mulf %160, %249 : vector<8x128xf32>
    %251 = arith.addf %247, %250 : vector<8x128xf32>
    %c77 = arith.constant 77 : index
    %252 = memref.load %arg2[%c77] : memref<189xf32, #tpu.memory_space<smem>>
    %253 = vector.broadcast %252 : f32 to vector<8x128xf32>
    %254 = arith.mulf %167, %253 : vector<8x128xf32>
    %255 = arith.addf %251, %254 : vector<8x128xf32>
    %c16_37 = arith.constant 16 : index
    %256 = memref.load %arg3[%c16_37] : memref<42xf32, #tpu.memory_space<smem>>
    %257 = vector.broadcast %256 : f32 to vector<8x128xf32>
    %258 = arith.addf %255, %257 : vector<8x128xf32>
    %c36 = arith.constant 36 : index
    %259 = memref.load %arg2[%c36] : memref<189xf32, #tpu.memory_space<smem>>
    %260 = vector.broadcast %259 : f32 to vector<8x128xf32>
    %261 = arith.mulf %153, %260 : vector<8x128xf32>
    %c37 = arith.constant 37 : index
    %262 = memref.load %arg2[%c37] : memref<189xf32, #tpu.memory_space<smem>>
    %263 = vector.broadcast %262 : f32 to vector<8x128xf32>
    %264 = arith.mulf %160, %263 : vector<8x128xf32>
    %265 = arith.addf %261, %264 : vector<8x128xf32>
    %c38 = arith.constant 38 : index
    %266 = memref.load %arg2[%c38] : memref<189xf32, #tpu.memory_space<smem>>
    %267 = vector.broadcast %266 : f32 to vector<8x128xf32>
    %268 = arith.mulf %167, %267 : vector<8x128xf32>
    %269 = arith.addf %265, %268 : vector<8x128xf32>
    %c9_38 = arith.constant 9 : index
    %270 = memref.load %arg3[%c9_38] : memref<42xf32, #tpu.memory_space<smem>>
    %271 = vector.broadcast %270 : f32 to vector<8x128xf32>
    %272 = arith.addf %269, %271 : vector<8x128xf32>
    %c39 = arith.constant 39 : index
    %273 = memref.load %arg2[%c39] : memref<189xf32, #tpu.memory_space<smem>>
    %274 = vector.broadcast %273 : f32 to vector<8x128xf32>
    %275 = arith.mulf %153, %274 : vector<8x128xf32>
    %c40 = arith.constant 40 : index
    %276 = memref.load %arg2[%c40] : memref<189xf32, #tpu.memory_space<smem>>
    %277 = vector.broadcast %276 : f32 to vector<8x128xf32>
    %278 = arith.mulf %160, %277 : vector<8x128xf32>
    %279 = arith.addf %275, %278 : vector<8x128xf32>
    %c41 = arith.constant 41 : index
    %280 = memref.load %arg2[%c41] : memref<189xf32, #tpu.memory_space<smem>>
    %281 = vector.broadcast %280 : f32 to vector<8x128xf32>
    %282 = arith.mulf %167, %281 : vector<8x128xf32>
    %283 = arith.addf %279, %282 : vector<8x128xf32>
    %c10_39 = arith.constant 10 : index
    %284 = memref.load %arg3[%c10_39] : memref<42xf32, #tpu.memory_space<smem>>
    %285 = vector.broadcast %284 : f32 to vector<8x128xf32>
    %286 = arith.addf %283, %285 : vector<8x128xf32>
    %c42 = arith.constant 42 : index
    %287 = memref.load %arg2[%c42] : memref<189xf32, #tpu.memory_space<smem>>
    %288 = vector.broadcast %287 : f32 to vector<8x128xf32>
    %289 = arith.mulf %153, %288 : vector<8x128xf32>
    %c43 = arith.constant 43 : index
    %290 = memref.load %arg2[%c43] : memref<189xf32, #tpu.memory_space<smem>>
    %291 = vector.broadcast %290 : f32 to vector<8x128xf32>
    %292 = arith.mulf %160, %291 : vector<8x128xf32>
    %293 = arith.addf %289, %292 : vector<8x128xf32>
    %c44 = arith.constant 44 : index
    %294 = memref.load %arg2[%c44] : memref<189xf32, #tpu.memory_space<smem>>
    %295 = vector.broadcast %294 : f32 to vector<8x128xf32>
    %296 = arith.mulf %167, %295 : vector<8x128xf32>
    %297 = arith.addf %293, %296 : vector<8x128xf32>
    %c11 = arith.constant 11 : index
    %298 = memref.load %arg3[%c11] : memref<42xf32, #tpu.memory_space<smem>>
    %299 = vector.broadcast %298 : f32 to vector<8x128xf32>
    %300 = arith.addf %297, %299 : vector<8x128xf32>
    %301 = arith.mulf %90, %216 : vector<8x128xf32>
    %302 = arith.mulf %101, %223 : vector<8x128xf32>
    %303 = arith.mulf %112, %230 : vector<8x128xf32>
    %c45 = arith.constant 45 : index
    %304 = memref.load %arg2[%c45] : memref<189xf32, #tpu.memory_space<smem>>
    %305 = vector.broadcast %304 : f32 to vector<8x128xf32>
    %306 = arith.mulf %301, %305 : vector<8x128xf32>
    %c46 = arith.constant 46 : index
    %307 = memref.load %arg2[%c46] : memref<189xf32, #tpu.memory_space<smem>>
    %308 = vector.broadcast %307 : f32 to vector<8x128xf32>
    %309 = arith.mulf %302, %308 : vector<8x128xf32>
    %310 = arith.addf %306, %309 : vector<8x128xf32>
    %c47 = arith.constant 47 : index
    %311 = memref.load %arg2[%c47] : memref<189xf32, #tpu.memory_space<smem>>
    %312 = vector.broadcast %311 : f32 to vector<8x128xf32>
    %313 = arith.mulf %303, %312 : vector<8x128xf32>
    %314 = arith.addf %310, %313 : vector<8x128xf32>
    %c48 = arith.constant 48 : index
    %315 = memref.load %arg2[%c48] : memref<189xf32, #tpu.memory_space<smem>>
    %316 = vector.broadcast %315 : f32 to vector<8x128xf32>
    %317 = arith.mulf %301, %316 : vector<8x128xf32>
    %c49 = arith.constant 49 : index
    %318 = memref.load %arg2[%c49] : memref<189xf32, #tpu.memory_space<smem>>
    %319 = vector.broadcast %318 : f32 to vector<8x128xf32>
    %320 = arith.mulf %302, %319 : vector<8x128xf32>
    %321 = arith.addf %317, %320 : vector<8x128xf32>
    %c50 = arith.constant 50 : index
    %322 = memref.load %arg2[%c50] : memref<189xf32, #tpu.memory_space<smem>>
    %323 = vector.broadcast %322 : f32 to vector<8x128xf32>
    %324 = arith.mulf %303, %323 : vector<8x128xf32>
    %325 = arith.addf %321, %324 : vector<8x128xf32>
    %c51 = arith.constant 51 : index
    %326 = memref.load %arg2[%c51] : memref<189xf32, #tpu.memory_space<smem>>
    %327 = vector.broadcast %326 : f32 to vector<8x128xf32>
    %328 = arith.mulf %301, %327 : vector<8x128xf32>
    %c52 = arith.constant 52 : index
    %329 = memref.load %arg2[%c52] : memref<189xf32, #tpu.memory_space<smem>>
    %330 = vector.broadcast %329 : f32 to vector<8x128xf32>
    %331 = arith.mulf %302, %330 : vector<8x128xf32>
    %332 = arith.addf %328, %331 : vector<8x128xf32>
    %c53 = arith.constant 53 : index
    %333 = memref.load %arg2[%c53] : memref<189xf32, #tpu.memory_space<smem>>
    %334 = vector.broadcast %333 : f32 to vector<8x128xf32>
    %335 = arith.mulf %303, %334 : vector<8x128xf32>
    %336 = arith.addf %332, %335 : vector<8x128xf32>
    %337 = arith.addf %272, %314 : vector<8x128xf32>
    %338 = arith.addf %286, %325 : vector<8x128xf32>
    %339 = arith.addf %300, %336 : vector<8x128xf32>
    %340 = arith.mulf %5, %244 : vector<8x128xf32>
    %341 = arith.mulf %7, %258 : vector<8x128xf32>
    %c63 = arith.constant 63 : index
    %342 = memref.load %arg2[%c63] : memref<189xf32, #tpu.memory_space<smem>>
    %343 = vector.broadcast %342 : f32 to vector<8x128xf32>
    %344 = arith.mulf %340, %343 : vector<8x128xf32>
    %c64 = arith.constant 64 : index
    %345 = memref.load %arg2[%c64] : memref<189xf32, #tpu.memory_space<smem>>
    %346 = vector.broadcast %345 : f32 to vector<8x128xf32>
    %347 = arith.mulf %341, %346 : vector<8x128xf32>
    %348 = arith.addf %344, %347 : vector<8x128xf32>
    %c66 = arith.constant 66 : index
    %349 = memref.load %arg2[%c66] : memref<189xf32, #tpu.memory_space<smem>>
    %350 = vector.broadcast %349 : f32 to vector<8x128xf32>
    %351 = arith.mulf %340, %350 : vector<8x128xf32>
    %c67 = arith.constant 67 : index
    %352 = memref.load %arg2[%c67] : memref<189xf32, #tpu.memory_space<smem>>
    %353 = vector.broadcast %352 : f32 to vector<8x128xf32>
    %354 = arith.mulf %341, %353 : vector<8x128xf32>
    %355 = arith.addf %351, %354 : vector<8x128xf32>
    %c69 = arith.constant 69 : index
    %356 = memref.load %arg2[%c69] : memref<189xf32, #tpu.memory_space<smem>>
    %357 = vector.broadcast %356 : f32 to vector<8x128xf32>
    %358 = arith.mulf %340, %357 : vector<8x128xf32>
    %c70 = arith.constant 70 : index
    %359 = memref.load %arg2[%c70] : memref<189xf32, #tpu.memory_space<smem>>
    %360 = vector.broadcast %359 : f32 to vector<8x128xf32>
    %361 = arith.mulf %341, %360 : vector<8x128xf32>
    %362 = arith.addf %358, %361 : vector<8x128xf32>
    %363 = arith.addf %337, %348 : vector<8x128xf32>
    %364 = arith.addf %338, %355 : vector<8x128xf32>
    %365 = arith.addf %339, %362 : vector<8x128xf32>
    %cst_40 = arith.constant 2.000000e+01 : f32
    %366 = vector.broadcast %cst_40 : f32 to vector<8x128xf32>
    %367 = arith.minimumf %363, %366 : vector<8x128xf32>
    %368 = math.exp %367 : vector<8x128xf32>
    %cst_41 = arith.constant 2.000000e+01 : f32
    %369 = vector.broadcast %cst_41 : f32 to vector<8x128xf32>
    %370 = arith.cmpf ogt, %363, %369 : vector<8x128xf32>
    %371 = math.log1p %368 : vector<8x128xf32>
    %372 = arith.select %370, %363, %371 : vector<8x128xi1>, vector<8x128xf32>
    %cst_42 = arith.constant 1.000000e+00 : f32
    %373 = vector.broadcast %cst_42 : f32 to vector<8x128xf32>
    %374 = arith.addf %373, %368 : vector<8x128xf32>
    %375 = tpu.reciprocal %374 : vector<8x128xf32> -> vector<8x128xf32>
    %376 = arith.mulf %368, %375 : vector<8x128xf32>
    %cst_43 = arith.constant 2.000000e+01 : f32
    %377 = vector.broadcast %cst_43 : f32 to vector<8x128xf32>
    %378 = arith.minimumf %364, %377 : vector<8x128xf32>
    %379 = math.exp %378 : vector<8x128xf32>
    %cst_44 = arith.constant 2.000000e+01 : f32
    %380 = vector.broadcast %cst_44 : f32 to vector<8x128xf32>
    %381 = arith.cmpf ogt, %364, %380 : vector<8x128xf32>
    %382 = math.log1p %379 : vector<8x128xf32>
    %383 = arith.select %381, %364, %382 : vector<8x128xi1>, vector<8x128xf32>
    %cst_45 = arith.constant 1.000000e+00 : f32
    %384 = vector.broadcast %cst_45 : f32 to vector<8x128xf32>
    %385 = arith.addf %384, %379 : vector<8x128xf32>
    %386 = tpu.reciprocal %385 : vector<8x128xf32> -> vector<8x128xf32>
    %387 = arith.mulf %379, %386 : vector<8x128xf32>
    %cst_46 = arith.constant 2.000000e+01 : f32
    %388 = vector.broadcast %cst_46 : f32 to vector<8x128xf32>
    %389 = arith.minimumf %365, %388 : vector<8x128xf32>
    %390 = math.exp %389 : vector<8x128xf32>
    %cst_47 = arith.constant 2.000000e+01 : f32
    %391 = vector.broadcast %cst_47 : f32 to vector<8x128xf32>
    %392 = arith.cmpf ogt, %365, %391 : vector<8x128xf32>
    %393 = math.log1p %390 : vector<8x128xf32>
    %394 = arith.select %392, %365, %393 : vector<8x128xi1>, vector<8x128xf32>
    %cst_48 = arith.constant 1.000000e+00 : f32
    %395 = vector.broadcast %cst_48 : f32 to vector<8x128xf32>
    %396 = arith.addf %395, %390 : vector<8x128xf32>
    %397 = tpu.reciprocal %396 : vector<8x128xf32> -> vector<8x128xf32>
    %398 = arith.mulf %390, %397 : vector<8x128xf32>
    %c81 = arith.constant 81 : index
    %399 = memref.load %arg2[%c81] : memref<189xf32, #tpu.memory_space<smem>>
    %400 = vector.broadcast %399 : f32 to vector<8x128xf32>
    %401 = arith.mulf %153, %400 : vector<8x128xf32>
    %c82 = arith.constant 82 : index
    %402 = memref.load %arg2[%c82] : memref<189xf32, #tpu.memory_space<smem>>
    %403 = vector.broadcast %402 : f32 to vector<8x128xf32>
    %404 = arith.mulf %160, %403 : vector<8x128xf32>
    %405 = arith.addf %401, %404 : vector<8x128xf32>
    %c83 = arith.constant 83 : index
    %406 = memref.load %arg2[%c83] : memref<189xf32, #tpu.memory_space<smem>>
    %407 = vector.broadcast %406 : f32 to vector<8x128xf32>
    %408 = arith.mulf %167, %407 : vector<8x128xf32>
    %409 = arith.addf %405, %408 : vector<8x128xf32>
    %c18_49 = arith.constant 18 : index
    %410 = memref.load %arg3[%c18_49] : memref<42xf32, #tpu.memory_space<smem>>
    %411 = vector.broadcast %410 : f32 to vector<8x128xf32>
    %412 = arith.addf %409, %411 : vector<8x128xf32>
    %c84 = arith.constant 84 : index
    %413 = memref.load %arg2[%c84] : memref<189xf32, #tpu.memory_space<smem>>
    %414 = vector.broadcast %413 : f32 to vector<8x128xf32>
    %415 = arith.mulf %153, %414 : vector<8x128xf32>
    %c85 = arith.constant 85 : index
    %416 = memref.load %arg2[%c85] : memref<189xf32, #tpu.memory_space<smem>>
    %417 = vector.broadcast %416 : f32 to vector<8x128xf32>
    %418 = arith.mulf %160, %417 : vector<8x128xf32>
    %419 = arith.addf %415, %418 : vector<8x128xf32>
    %c86 = arith.constant 86 : index
    %420 = memref.load %arg2[%c86] : memref<189xf32, #tpu.memory_space<smem>>
    %421 = vector.broadcast %420 : f32 to vector<8x128xf32>
    %422 = arith.mulf %167, %421 : vector<8x128xf32>
    %423 = arith.addf %419, %422 : vector<8x128xf32>
    %c19_50 = arith.constant 19 : index
    %424 = memref.load %arg3[%c19_50] : memref<42xf32, #tpu.memory_space<smem>>
    %425 = vector.broadcast %424 : f32 to vector<8x128xf32>
    %426 = arith.addf %423, %425 : vector<8x128xf32>
    %c87 = arith.constant 87 : index
    %427 = memref.load %arg2[%c87] : memref<189xf32, #tpu.memory_space<smem>>
    %428 = vector.broadcast %427 : f32 to vector<8x128xf32>
    %429 = arith.mulf %153, %428 : vector<8x128xf32>
    %c88 = arith.constant 88 : index
    %430 = memref.load %arg2[%c88] : memref<189xf32, #tpu.memory_space<smem>>
    %431 = vector.broadcast %430 : f32 to vector<8x128xf32>
    %432 = arith.mulf %160, %431 : vector<8x128xf32>
    %433 = arith.addf %429, %432 : vector<8x128xf32>
    %c89 = arith.constant 89 : index
    %434 = memref.load %arg2[%c89] : memref<189xf32, #tpu.memory_space<smem>>
    %435 = vector.broadcast %434 : f32 to vector<8x128xf32>
    %436 = arith.mulf %167, %435 : vector<8x128xf32>
    %437 = arith.addf %433, %436 : vector<8x128xf32>
    %c20 = arith.constant 20 : index
    %438 = memref.load %arg3[%c20] : memref<42xf32, #tpu.memory_space<smem>>
    %439 = vector.broadcast %438 : f32 to vector<8x128xf32>
    %440 = arith.addf %437, %439 : vector<8x128xf32>
    %cst_51 = arith.constant 2.000000e+01 : f32
    %441 = vector.broadcast %cst_51 : f32 to vector<8x128xf32>
    %442 = arith.cmpf ogt, %412, %441 : vector<8x128xf32>
    %cst_52 = arith.constant 2.000000e+01 : f32
    %443 = vector.broadcast %cst_52 : f32 to vector<8x128xf32>
    %444 = arith.minimumf %412, %443 : vector<8x128xf32>
    %445 = math.exp %444 : vector<8x128xf32>
    %446 = math.log1p %445 : vector<8x128xf32>
    %447 = arith.select %442, %412, %446 : vector<8x128xi1>, vector<8x128xf32>
    %cst_53 = arith.constant 2.000000e+01 : f32
    %448 = vector.broadcast %cst_53 : f32 to vector<8x128xf32>
    %449 = arith.cmpf ogt, %426, %448 : vector<8x128xf32>
    %cst_54 = arith.constant 2.000000e+01 : f32
    %450 = vector.broadcast %cst_54 : f32 to vector<8x128xf32>
    %451 = arith.minimumf %426, %450 : vector<8x128xf32>
    %452 = math.exp %451 : vector<8x128xf32>
    %453 = math.log1p %452 : vector<8x128xf32>
    %454 = arith.select %449, %426, %453 : vector<8x128xi1>, vector<8x128xf32>
    %cst_55 = arith.constant 2.000000e+01 : f32
    %455 = vector.broadcast %cst_55 : f32 to vector<8x128xf32>
    %456 = arith.cmpf ogt, %440, %455 : vector<8x128xf32>
    %cst_56 = arith.constant 2.000000e+01 : f32
    %457 = vector.broadcast %cst_56 : f32 to vector<8x128xf32>
    %458 = arith.minimumf %440, %457 : vector<8x128xf32>
    %459 = math.exp %458 : vector<8x128xf32>
    %460 = math.log1p %459 : vector<8x128xf32>
    %461 = arith.select %456, %440, %460 : vector<8x128xi1>, vector<8x128xf32>
    %c108 = arith.constant 108 : index
    %462 = memref.load %arg2[%c108] : memref<189xf32, #tpu.memory_space<smem>>
    %463 = vector.broadcast %462 : f32 to vector<8x128xf32>
    %464 = arith.mulf %447, %463 : vector<8x128xf32>
    %c109 = arith.constant 109 : index
    %465 = memref.load %arg2[%c109] : memref<189xf32, #tpu.memory_space<smem>>
    %466 = vector.broadcast %465 : f32 to vector<8x128xf32>
    %467 = arith.mulf %454, %466 : vector<8x128xf32>
    %468 = arith.addf %464, %467 : vector<8x128xf32>
    %c110 = arith.constant 110 : index
    %469 = memref.load %arg2[%c110] : memref<189xf32, #tpu.memory_space<smem>>
    %470 = vector.broadcast %469 : f32 to vector<8x128xf32>
    %471 = arith.mulf %461, %470 : vector<8x128xf32>
    %472 = arith.addf %468, %471 : vector<8x128xf32>
    %c24 = arith.constant 24 : index
    %473 = memref.load %arg3[%c24] : memref<42xf32, #tpu.memory_space<smem>>
    %474 = vector.broadcast %473 : f32 to vector<8x128xf32>
    %475 = arith.addf %472, %474 : vector<8x128xf32>
    %c111 = arith.constant 111 : index
    %476 = memref.load %arg2[%c111] : memref<189xf32, #tpu.memory_space<smem>>
    %477 = vector.broadcast %476 : f32 to vector<8x128xf32>
    %478 = arith.mulf %447, %477 : vector<8x128xf32>
    %c112 = arith.constant 112 : index
    %479 = memref.load %arg2[%c112] : memref<189xf32, #tpu.memory_space<smem>>
    %480 = vector.broadcast %479 : f32 to vector<8x128xf32>
    %481 = arith.mulf %454, %480 : vector<8x128xf32>
    %482 = arith.addf %478, %481 : vector<8x128xf32>
    %c113 = arith.constant 113 : index
    %483 = memref.load %arg2[%c113] : memref<189xf32, #tpu.memory_space<smem>>
    %484 = vector.broadcast %483 : f32 to vector<8x128xf32>
    %485 = arith.mulf %461, %484 : vector<8x128xf32>
    %486 = arith.addf %482, %485 : vector<8x128xf32>
    %c25 = arith.constant 25 : index
    %487 = memref.load %arg3[%c25] : memref<42xf32, #tpu.memory_space<smem>>
    %488 = vector.broadcast %487 : f32 to vector<8x128xf32>
    %489 = arith.addf %486, %488 : vector<8x128xf32>
    %c114 = arith.constant 114 : index
    %490 = memref.load %arg2[%c114] : memref<189xf32, #tpu.memory_space<smem>>
    %491 = vector.broadcast %490 : f32 to vector<8x128xf32>
    %492 = arith.mulf %447, %491 : vector<8x128xf32>
    %c115 = arith.constant 115 : index
    %493 = memref.load %arg2[%c115] : memref<189xf32, #tpu.memory_space<smem>>
    %494 = vector.broadcast %493 : f32 to vector<8x128xf32>
    %495 = arith.mulf %454, %494 : vector<8x128xf32>
    %496 = arith.addf %492, %495 : vector<8x128xf32>
    %c116 = arith.constant 116 : index
    %497 = memref.load %arg2[%c116] : memref<189xf32, #tpu.memory_space<smem>>
    %498 = vector.broadcast %497 : f32 to vector<8x128xf32>
    %499 = arith.mulf %461, %498 : vector<8x128xf32>
    %500 = arith.addf %496, %499 : vector<8x128xf32>
    %c26 = arith.constant 26 : index
    %501 = memref.load %arg3[%c26] : memref<42xf32, #tpu.memory_space<smem>>
    %502 = vector.broadcast %501 : f32 to vector<8x128xf32>
    %503 = arith.addf %500, %502 : vector<8x128xf32>
    %cst_57 = arith.constant 2.000000e+01 : f32
    %504 = vector.broadcast %cst_57 : f32 to vector<8x128xf32>
    %505 = arith.cmpf ogt, %475, %504 : vector<8x128xf32>
    %cst_58 = arith.constant 2.000000e+01 : f32
    %506 = vector.broadcast %cst_58 : f32 to vector<8x128xf32>
    %507 = arith.minimumf %475, %506 : vector<8x128xf32>
    %508 = math.exp %507 : vector<8x128xf32>
    %509 = math.log1p %508 : vector<8x128xf32>
    %510 = arith.select %505, %475, %509 : vector<8x128xi1>, vector<8x128xf32>
    %cst_59 = arith.constant 2.000000e+01 : f32
    %511 = vector.broadcast %cst_59 : f32 to vector<8x128xf32>
    %512 = arith.cmpf ogt, %489, %511 : vector<8x128xf32>
    %cst_60 = arith.constant 2.000000e+01 : f32
    %513 = vector.broadcast %cst_60 : f32 to vector<8x128xf32>
    %514 = arith.minimumf %489, %513 : vector<8x128xf32>
    %515 = math.exp %514 : vector<8x128xf32>
    %516 = math.log1p %515 : vector<8x128xf32>
    %517 = arith.select %512, %489, %516 : vector<8x128xi1>, vector<8x128xf32>
    %cst_61 = arith.constant 2.000000e+01 : f32
    %518 = vector.broadcast %cst_61 : f32 to vector<8x128xf32>
    %519 = arith.cmpf ogt, %503, %518 : vector<8x128xf32>
    %cst_62 = arith.constant 2.000000e+01 : f32
    %520 = vector.broadcast %cst_62 : f32 to vector<8x128xf32>
    %521 = arith.minimumf %503, %520 : vector<8x128xf32>
    %522 = math.exp %521 : vector<8x128xf32>
    %523 = math.log1p %522 : vector<8x128xf32>
    %524 = arith.select %519, %503, %523 : vector<8x128xi1>, vector<8x128xf32>
    %c126 = arith.constant 126 : index
    %525 = memref.load %arg2[%c126] : memref<189xf32, #tpu.memory_space<smem>>
    %526 = vector.broadcast %525 : f32 to vector<8x128xf32>
    %527 = arith.mulf %447, %526 : vector<8x128xf32>
    %c127 = arith.constant 127 : index
    %528 = memref.load %arg2[%c127] : memref<189xf32, #tpu.memory_space<smem>>
    %529 = vector.broadcast %528 : f32 to vector<8x128xf32>
    %530 = arith.mulf %454, %529 : vector<8x128xf32>
    %531 = arith.addf %527, %530 : vector<8x128xf32>
    %c128 = arith.constant 128 : index
    %532 = memref.load %arg2[%c128] : memref<189xf32, #tpu.memory_space<smem>>
    %533 = vector.broadcast %532 : f32 to vector<8x128xf32>
    %534 = arith.mulf %461, %533 : vector<8x128xf32>
    %535 = arith.addf %531, %534 : vector<8x128xf32>
    %c27_63 = arith.constant 27 : index
    %536 = memref.load %arg3[%c27_63] : memref<42xf32, #tpu.memory_space<smem>>
    %537 = vector.broadcast %536 : f32 to vector<8x128xf32>
    %538 = arith.addf %535, %537 : vector<8x128xf32>
    %c129 = arith.constant 129 : index
    %539 = memref.load %arg2[%c129] : memref<189xf32, #tpu.memory_space<smem>>
    %540 = vector.broadcast %539 : f32 to vector<8x128xf32>
    %541 = arith.mulf %447, %540 : vector<8x128xf32>
    %c130 = arith.constant 130 : index
    %542 = memref.load %arg2[%c130] : memref<189xf32, #tpu.memory_space<smem>>
    %543 = vector.broadcast %542 : f32 to vector<8x128xf32>
    %544 = arith.mulf %454, %543 : vector<8x128xf32>
    %545 = arith.addf %541, %544 : vector<8x128xf32>
    %c131 = arith.constant 131 : index
    %546 = memref.load %arg2[%c131] : memref<189xf32, #tpu.memory_space<smem>>
    %547 = vector.broadcast %546 : f32 to vector<8x128xf32>
    %548 = arith.mulf %461, %547 : vector<8x128xf32>
    %549 = arith.addf %545, %548 : vector<8x128xf32>
    %c28_64 = arith.constant 28 : index
    %550 = memref.load %arg3[%c28_64] : memref<42xf32, #tpu.memory_space<smem>>
    %551 = vector.broadcast %550 : f32 to vector<8x128xf32>
    %552 = arith.addf %549, %551 : vector<8x128xf32>
    %c90 = arith.constant 90 : index
    %553 = memref.load %arg2[%c90] : memref<189xf32, #tpu.memory_space<smem>>
    %554 = vector.broadcast %553 : f32 to vector<8x128xf32>
    %555 = arith.mulf %447, %554 : vector<8x128xf32>
    %c91 = arith.constant 91 : index
    %556 = memref.load %arg2[%c91] : memref<189xf32, #tpu.memory_space<smem>>
    %557 = vector.broadcast %556 : f32 to vector<8x128xf32>
    %558 = arith.mulf %454, %557 : vector<8x128xf32>
    %559 = arith.addf %555, %558 : vector<8x128xf32>
    %c92 = arith.constant 92 : index
    %560 = memref.load %arg2[%c92] : memref<189xf32, #tpu.memory_space<smem>>
    %561 = vector.broadcast %560 : f32 to vector<8x128xf32>
    %562 = arith.mulf %461, %561 : vector<8x128xf32>
    %563 = arith.addf %559, %562 : vector<8x128xf32>
    %c21_65 = arith.constant 21 : index
    %564 = memref.load %arg3[%c21_65] : memref<42xf32, #tpu.memory_space<smem>>
    %565 = vector.broadcast %564 : f32 to vector<8x128xf32>
    %566 = arith.addf %563, %565 : vector<8x128xf32>
    %c93 = arith.constant 93 : index
    %567 = memref.load %arg2[%c93] : memref<189xf32, #tpu.memory_space<smem>>
    %568 = vector.broadcast %567 : f32 to vector<8x128xf32>
    %569 = arith.mulf %447, %568 : vector<8x128xf32>
    %c94 = arith.constant 94 : index
    %570 = memref.load %arg2[%c94] : memref<189xf32, #tpu.memory_space<smem>>
    %571 = vector.broadcast %570 : f32 to vector<8x128xf32>
    %572 = arith.mulf %454, %571 : vector<8x128xf32>
    %573 = arith.addf %569, %572 : vector<8x128xf32>
    %c95 = arith.constant 95 : index
    %574 = memref.load %arg2[%c95] : memref<189xf32, #tpu.memory_space<smem>>
    %575 = vector.broadcast %574 : f32 to vector<8x128xf32>
    %576 = arith.mulf %461, %575 : vector<8x128xf32>
    %577 = arith.addf %573, %576 : vector<8x128xf32>
    %c22_66 = arith.constant 22 : index
    %578 = memref.load %arg3[%c22_66] : memref<42xf32, #tpu.memory_space<smem>>
    %579 = vector.broadcast %578 : f32 to vector<8x128xf32>
    %580 = arith.addf %577, %579 : vector<8x128xf32>
    %c96 = arith.constant 96 : index
    %581 = memref.load %arg2[%c96] : memref<189xf32, #tpu.memory_space<smem>>
    %582 = vector.broadcast %581 : f32 to vector<8x128xf32>
    %583 = arith.mulf %447, %582 : vector<8x128xf32>
    %c97 = arith.constant 97 : index
    %584 = memref.load %arg2[%c97] : memref<189xf32, #tpu.memory_space<smem>>
    %585 = vector.broadcast %584 : f32 to vector<8x128xf32>
    %586 = arith.mulf %454, %585 : vector<8x128xf32>
    %587 = arith.addf %583, %586 : vector<8x128xf32>
    %c98 = arith.constant 98 : index
    %588 = memref.load %arg2[%c98] : memref<189xf32, #tpu.memory_space<smem>>
    %589 = vector.broadcast %588 : f32 to vector<8x128xf32>
    %590 = arith.mulf %461, %589 : vector<8x128xf32>
    %591 = arith.addf %587, %590 : vector<8x128xf32>
    %c23 = arith.constant 23 : index
    %592 = memref.load %arg3[%c23] : memref<42xf32, #tpu.memory_space<smem>>
    %593 = vector.broadcast %592 : f32 to vector<8x128xf32>
    %594 = arith.addf %591, %593 : vector<8x128xf32>
    %595 = arith.mulf %372, %510 : vector<8x128xf32>
    %596 = arith.mulf %383, %517 : vector<8x128xf32>
    %597 = arith.mulf %394, %524 : vector<8x128xf32>
    %c99 = arith.constant 99 : index
    %598 = memref.load %arg2[%c99] : memref<189xf32, #tpu.memory_space<smem>>
    %599 = vector.broadcast %598 : f32 to vector<8x128xf32>
    %600 = arith.mulf %595, %599 : vector<8x128xf32>
    %c100 = arith.constant 100 : index
    %601 = memref.load %arg2[%c100] : memref<189xf32, #tpu.memory_space<smem>>
    %602 = vector.broadcast %601 : f32 to vector<8x128xf32>
    %603 = arith.mulf %596, %602 : vector<8x128xf32>
    %604 = arith.addf %600, %603 : vector<8x128xf32>
    %c101 = arith.constant 101 : index
    %605 = memref.load %arg2[%c101] : memref<189xf32, #tpu.memory_space<smem>>
    %606 = vector.broadcast %605 : f32 to vector<8x128xf32>
    %607 = arith.mulf %597, %606 : vector<8x128xf32>
    %608 = arith.addf %604, %607 : vector<8x128xf32>
    %c102 = arith.constant 102 : index
    %609 = memref.load %arg2[%c102] : memref<189xf32, #tpu.memory_space<smem>>
    %610 = vector.broadcast %609 : f32 to vector<8x128xf32>
    %611 = arith.mulf %595, %610 : vector<8x128xf32>
    %c103 = arith.constant 103 : index
    %612 = memref.load %arg2[%c103] : memref<189xf32, #tpu.memory_space<smem>>
    %613 = vector.broadcast %612 : f32 to vector<8x128xf32>
    %614 = arith.mulf %596, %613 : vector<8x128xf32>
    %615 = arith.addf %611, %614 : vector<8x128xf32>
    %c104 = arith.constant 104 : index
    %616 = memref.load %arg2[%c104] : memref<189xf32, #tpu.memory_space<smem>>
    %617 = vector.broadcast %616 : f32 to vector<8x128xf32>
    %618 = arith.mulf %597, %617 : vector<8x128xf32>
    %619 = arith.addf %615, %618 : vector<8x128xf32>
    %c105 = arith.constant 105 : index
    %620 = memref.load %arg2[%c105] : memref<189xf32, #tpu.memory_space<smem>>
    %621 = vector.broadcast %620 : f32 to vector<8x128xf32>
    %622 = arith.mulf %595, %621 : vector<8x128xf32>
    %c106 = arith.constant 106 : index
    %623 = memref.load %arg2[%c106] : memref<189xf32, #tpu.memory_space<smem>>
    %624 = vector.broadcast %623 : f32 to vector<8x128xf32>
    %625 = arith.mulf %596, %624 : vector<8x128xf32>
    %626 = arith.addf %622, %625 : vector<8x128xf32>
    %c107 = arith.constant 107 : index
    %627 = memref.load %arg2[%c107] : memref<189xf32, #tpu.memory_space<smem>>
    %628 = vector.broadcast %627 : f32 to vector<8x128xf32>
    %629 = arith.mulf %597, %628 : vector<8x128xf32>
    %630 = arith.addf %626, %629 : vector<8x128xf32>
    %631 = arith.addf %566, %608 : vector<8x128xf32>
    %632 = arith.addf %580, %619 : vector<8x128xf32>
    %633 = arith.addf %594, %630 : vector<8x128xf32>
    %634 = arith.mulf %5, %538 : vector<8x128xf32>
    %635 = arith.mulf %7, %552 : vector<8x128xf32>
    %c117 = arith.constant 117 : index
    %636 = memref.load %arg2[%c117] : memref<189xf32, #tpu.memory_space<smem>>
    %637 = vector.broadcast %636 : f32 to vector<8x128xf32>
    %638 = arith.mulf %634, %637 : vector<8x128xf32>
    %c118 = arith.constant 118 : index
    %639 = memref.load %arg2[%c118] : memref<189xf32, #tpu.memory_space<smem>>
    %640 = vector.broadcast %639 : f32 to vector<8x128xf32>
    %641 = arith.mulf %635, %640 : vector<8x128xf32>
    %642 = arith.addf %638, %641 : vector<8x128xf32>
    %c120 = arith.constant 120 : index
    %643 = memref.load %arg2[%c120] : memref<189xf32, #tpu.memory_space<smem>>
    %644 = vector.broadcast %643 : f32 to vector<8x128xf32>
    %645 = arith.mulf %634, %644 : vector<8x128xf32>
    %c121 = arith.constant 121 : index
    %646 = memref.load %arg2[%c121] : memref<189xf32, #tpu.memory_space<smem>>
    %647 = vector.broadcast %646 : f32 to vector<8x128xf32>
    %648 = arith.mulf %635, %647 : vector<8x128xf32>
    %649 = arith.addf %645, %648 : vector<8x128xf32>
    %c123 = arith.constant 123 : index
    %650 = memref.load %arg2[%c123] : memref<189xf32, #tpu.memory_space<smem>>
    %651 = vector.broadcast %650 : f32 to vector<8x128xf32>
    %652 = arith.mulf %634, %651 : vector<8x128xf32>
    %c124 = arith.constant 124 : index
    %653 = memref.load %arg2[%c124] : memref<189xf32, #tpu.memory_space<smem>>
    %654 = vector.broadcast %653 : f32 to vector<8x128xf32>
    %655 = arith.mulf %635, %654 : vector<8x128xf32>
    %656 = arith.addf %652, %655 : vector<8x128xf32>
    %657 = arith.addf %631, %642 : vector<8x128xf32>
    %658 = arith.addf %632, %649 : vector<8x128xf32>
    %659 = arith.addf %633, %656 : vector<8x128xf32>
    %cst_67 = arith.constant 2.000000e+01 : f32
    %660 = vector.broadcast %cst_67 : f32 to vector<8x128xf32>
    %661 = arith.minimumf %657, %660 : vector<8x128xf32>
    %662 = math.exp %661 : vector<8x128xf32>
    %cst_68 = arith.constant 2.000000e+01 : f32
    %663 = vector.broadcast %cst_68 : f32 to vector<8x128xf32>
    %664 = arith.cmpf ogt, %657, %663 : vector<8x128xf32>
    %665 = math.log1p %662 : vector<8x128xf32>
    %666 = arith.select %664, %657, %665 : vector<8x128xi1>, vector<8x128xf32>
    %cst_69 = arith.constant 1.000000e+00 : f32
    %667 = vector.broadcast %cst_69 : f32 to vector<8x128xf32>
    %668 = arith.addf %667, %662 : vector<8x128xf32>
    %669 = tpu.reciprocal %668 : vector<8x128xf32> -> vector<8x128xf32>
    %670 = arith.mulf %662, %669 : vector<8x128xf32>
    %cst_70 = arith.constant 2.000000e+01 : f32
    %671 = vector.broadcast %cst_70 : f32 to vector<8x128xf32>
    %672 = arith.minimumf %658, %671 : vector<8x128xf32>
    %673 = math.exp %672 : vector<8x128xf32>
    %cst_71 = arith.constant 2.000000e+01 : f32
    %674 = vector.broadcast %cst_71 : f32 to vector<8x128xf32>
    %675 = arith.cmpf ogt, %658, %674 : vector<8x128xf32>
    %676 = math.log1p %673 : vector<8x128xf32>
    %677 = arith.select %675, %658, %676 : vector<8x128xi1>, vector<8x128xf32>
    %cst_72 = arith.constant 1.000000e+00 : f32
    %678 = vector.broadcast %cst_72 : f32 to vector<8x128xf32>
    %679 = arith.addf %678, %673 : vector<8x128xf32>
    %680 = tpu.reciprocal %679 : vector<8x128xf32> -> vector<8x128xf32>
    %681 = arith.mulf %673, %680 : vector<8x128xf32>
    %cst_73 = arith.constant 2.000000e+01 : f32
    %682 = vector.broadcast %cst_73 : f32 to vector<8x128xf32>
    %683 = arith.minimumf %659, %682 : vector<8x128xf32>
    %684 = math.exp %683 : vector<8x128xf32>
    %cst_74 = arith.constant 2.000000e+01 : f32
    %685 = vector.broadcast %cst_74 : f32 to vector<8x128xf32>
    %686 = arith.cmpf ogt, %659, %685 : vector<8x128xf32>
    %687 = math.log1p %684 : vector<8x128xf32>
    %688 = arith.select %686, %659, %687 : vector<8x128xi1>, vector<8x128xf32>
    %cst_75 = arith.constant 1.000000e+00 : f32
    %689 = vector.broadcast %cst_75 : f32 to vector<8x128xf32>
    %690 = arith.addf %689, %684 : vector<8x128xf32>
    %691 = tpu.reciprocal %690 : vector<8x128xf32> -> vector<8x128xf32>
    %692 = arith.mulf %684, %691 : vector<8x128xf32>
    %c135 = arith.constant 135 : index
    %693 = memref.load %arg2[%c135] : memref<189xf32, #tpu.memory_space<smem>>
    %694 = vector.broadcast %693 : f32 to vector<8x128xf32>
    %695 = arith.mulf %447, %694 : vector<8x128xf32>
    %c136 = arith.constant 136 : index
    %696 = memref.load %arg2[%c136] : memref<189xf32, #tpu.memory_space<smem>>
    %697 = vector.broadcast %696 : f32 to vector<8x128xf32>
    %698 = arith.mulf %454, %697 : vector<8x128xf32>
    %699 = arith.addf %695, %698 : vector<8x128xf32>
    %c137 = arith.constant 137 : index
    %700 = memref.load %arg2[%c137] : memref<189xf32, #tpu.memory_space<smem>>
    %701 = vector.broadcast %700 : f32 to vector<8x128xf32>
    %702 = arith.mulf %461, %701 : vector<8x128xf32>
    %703 = arith.addf %699, %702 : vector<8x128xf32>
    %c30_76 = arith.constant 30 : index
    %704 = memref.load %arg3[%c30_76] : memref<42xf32, #tpu.memory_space<smem>>
    %705 = vector.broadcast %704 : f32 to vector<8x128xf32>
    %706 = arith.addf %703, %705 : vector<8x128xf32>
    %c138 = arith.constant 138 : index
    %707 = memref.load %arg2[%c138] : memref<189xf32, #tpu.memory_space<smem>>
    %708 = vector.broadcast %707 : f32 to vector<8x128xf32>
    %709 = arith.mulf %447, %708 : vector<8x128xf32>
    %c139 = arith.constant 139 : index
    %710 = memref.load %arg2[%c139] : memref<189xf32, #tpu.memory_space<smem>>
    %711 = vector.broadcast %710 : f32 to vector<8x128xf32>
    %712 = arith.mulf %454, %711 : vector<8x128xf32>
    %713 = arith.addf %709, %712 : vector<8x128xf32>
    %c140 = arith.constant 140 : index
    %714 = memref.load %arg2[%c140] : memref<189xf32, #tpu.memory_space<smem>>
    %715 = vector.broadcast %714 : f32 to vector<8x128xf32>
    %716 = arith.mulf %461, %715 : vector<8x128xf32>
    %717 = arith.addf %713, %716 : vector<8x128xf32>
    %c31_77 = arith.constant 31 : index
    %718 = memref.load %arg3[%c31_77] : memref<42xf32, #tpu.memory_space<smem>>
    %719 = vector.broadcast %718 : f32 to vector<8x128xf32>
    %720 = arith.addf %717, %719 : vector<8x128xf32>
    %c141 = arith.constant 141 : index
    %721 = memref.load %arg2[%c141] : memref<189xf32, #tpu.memory_space<smem>>
    %722 = vector.broadcast %721 : f32 to vector<8x128xf32>
    %723 = arith.mulf %447, %722 : vector<8x128xf32>
    %c142 = arith.constant 142 : index
    %724 = memref.load %arg2[%c142] : memref<189xf32, #tpu.memory_space<smem>>
    %725 = vector.broadcast %724 : f32 to vector<8x128xf32>
    %726 = arith.mulf %454, %725 : vector<8x128xf32>
    %727 = arith.addf %723, %726 : vector<8x128xf32>
    %c143 = arith.constant 143 : index
    %728 = memref.load %arg2[%c143] : memref<189xf32, #tpu.memory_space<smem>>
    %729 = vector.broadcast %728 : f32 to vector<8x128xf32>
    %730 = arith.mulf %461, %729 : vector<8x128xf32>
    %731 = arith.addf %727, %730 : vector<8x128xf32>
    %c32 = arith.constant 32 : index
    %732 = memref.load %arg3[%c32] : memref<42xf32, #tpu.memory_space<smem>>
    %733 = vector.broadcast %732 : f32 to vector<8x128xf32>
    %734 = arith.addf %731, %733 : vector<8x128xf32>
    %cst_78 = arith.constant 2.000000e+01 : f32
    %735 = vector.broadcast %cst_78 : f32 to vector<8x128xf32>
    %736 = arith.cmpf ogt, %706, %735 : vector<8x128xf32>
    %cst_79 = arith.constant 2.000000e+01 : f32
    %737 = vector.broadcast %cst_79 : f32 to vector<8x128xf32>
    %738 = arith.minimumf %706, %737 : vector<8x128xf32>
    %739 = math.exp %738 : vector<8x128xf32>
    %740 = math.log1p %739 : vector<8x128xf32>
    %741 = arith.select %736, %706, %740 : vector<8x128xi1>, vector<8x128xf32>
    %cst_80 = arith.constant 2.000000e+01 : f32
    %742 = vector.broadcast %cst_80 : f32 to vector<8x128xf32>
    %743 = arith.cmpf ogt, %720, %742 : vector<8x128xf32>
    %cst_81 = arith.constant 2.000000e+01 : f32
    %744 = vector.broadcast %cst_81 : f32 to vector<8x128xf32>
    %745 = arith.minimumf %720, %744 : vector<8x128xf32>
    %746 = math.exp %745 : vector<8x128xf32>
    %747 = math.log1p %746 : vector<8x128xf32>
    %748 = arith.select %743, %720, %747 : vector<8x128xi1>, vector<8x128xf32>
    %cst_82 = arith.constant 2.000000e+01 : f32
    %749 = vector.broadcast %cst_82 : f32 to vector<8x128xf32>
    %750 = arith.cmpf ogt, %734, %749 : vector<8x128xf32>
    %cst_83 = arith.constant 2.000000e+01 : f32
    %751 = vector.broadcast %cst_83 : f32 to vector<8x128xf32>
    %752 = arith.minimumf %734, %751 : vector<8x128xf32>
    %753 = math.exp %752 : vector<8x128xf32>
    %754 = math.log1p %753 : vector<8x128xf32>
    %755 = arith.select %750, %734, %754 : vector<8x128xi1>, vector<8x128xf32>
    %c162 = arith.constant 162 : index
    %756 = memref.load %arg2[%c162] : memref<189xf32, #tpu.memory_space<smem>>
    %757 = vector.broadcast %756 : f32 to vector<8x128xf32>
    %758 = arith.mulf %741, %757 : vector<8x128xf32>
    %c163 = arith.constant 163 : index
    %759 = memref.load %arg2[%c163] : memref<189xf32, #tpu.memory_space<smem>>
    %760 = vector.broadcast %759 : f32 to vector<8x128xf32>
    %761 = arith.mulf %748, %760 : vector<8x128xf32>
    %762 = arith.addf %758, %761 : vector<8x128xf32>
    %c164 = arith.constant 164 : index
    %763 = memref.load %arg2[%c164] : memref<189xf32, #tpu.memory_space<smem>>
    %764 = vector.broadcast %763 : f32 to vector<8x128xf32>
    %765 = arith.mulf %755, %764 : vector<8x128xf32>
    %766 = arith.addf %762, %765 : vector<8x128xf32>
    %c36_84 = arith.constant 36 : index
    %767 = memref.load %arg3[%c36_84] : memref<42xf32, #tpu.memory_space<smem>>
    %768 = vector.broadcast %767 : f32 to vector<8x128xf32>
    %769 = arith.addf %766, %768 : vector<8x128xf32>
    %c165 = arith.constant 165 : index
    %770 = memref.load %arg2[%c165] : memref<189xf32, #tpu.memory_space<smem>>
    %771 = vector.broadcast %770 : f32 to vector<8x128xf32>
    %772 = arith.mulf %741, %771 : vector<8x128xf32>
    %c166 = arith.constant 166 : index
    %773 = memref.load %arg2[%c166] : memref<189xf32, #tpu.memory_space<smem>>
    %774 = vector.broadcast %773 : f32 to vector<8x128xf32>
    %775 = arith.mulf %748, %774 : vector<8x128xf32>
    %776 = arith.addf %772, %775 : vector<8x128xf32>
    %c167 = arith.constant 167 : index
    %777 = memref.load %arg2[%c167] : memref<189xf32, #tpu.memory_space<smem>>
    %778 = vector.broadcast %777 : f32 to vector<8x128xf32>
    %779 = arith.mulf %755, %778 : vector<8x128xf32>
    %780 = arith.addf %776, %779 : vector<8x128xf32>
    %c37_85 = arith.constant 37 : index
    %781 = memref.load %arg3[%c37_85] : memref<42xf32, #tpu.memory_space<smem>>
    %782 = vector.broadcast %781 : f32 to vector<8x128xf32>
    %783 = arith.addf %780, %782 : vector<8x128xf32>
    %c168 = arith.constant 168 : index
    %784 = memref.load %arg2[%c168] : memref<189xf32, #tpu.memory_space<smem>>
    %785 = vector.broadcast %784 : f32 to vector<8x128xf32>
    %786 = arith.mulf %741, %785 : vector<8x128xf32>
    %c169 = arith.constant 169 : index
    %787 = memref.load %arg2[%c169] : memref<189xf32, #tpu.memory_space<smem>>
    %788 = vector.broadcast %787 : f32 to vector<8x128xf32>
    %789 = arith.mulf %748, %788 : vector<8x128xf32>
    %790 = arith.addf %786, %789 : vector<8x128xf32>
    %c170 = arith.constant 170 : index
    %791 = memref.load %arg2[%c170] : memref<189xf32, #tpu.memory_space<smem>>
    %792 = vector.broadcast %791 : f32 to vector<8x128xf32>
    %793 = arith.mulf %755, %792 : vector<8x128xf32>
    %794 = arith.addf %790, %793 : vector<8x128xf32>
    %c38_86 = arith.constant 38 : index
    %795 = memref.load %arg3[%c38_86] : memref<42xf32, #tpu.memory_space<smem>>
    %796 = vector.broadcast %795 : f32 to vector<8x128xf32>
    %797 = arith.addf %794, %796 : vector<8x128xf32>
    %cst_87 = arith.constant 2.000000e+01 : f32
    %798 = vector.broadcast %cst_87 : f32 to vector<8x128xf32>
    %799 = arith.cmpf ogt, %769, %798 : vector<8x128xf32>
    %cst_88 = arith.constant 2.000000e+01 : f32
    %800 = vector.broadcast %cst_88 : f32 to vector<8x128xf32>
    %801 = arith.minimumf %769, %800 : vector<8x128xf32>
    %802 = math.exp %801 : vector<8x128xf32>
    %803 = math.log1p %802 : vector<8x128xf32>
    %804 = arith.select %799, %769, %803 : vector<8x128xi1>, vector<8x128xf32>
    %cst_89 = arith.constant 2.000000e+01 : f32
    %805 = vector.broadcast %cst_89 : f32 to vector<8x128xf32>
    %806 = arith.cmpf ogt, %783, %805 : vector<8x128xf32>
    %cst_90 = arith.constant 2.000000e+01 : f32
    %807 = vector.broadcast %cst_90 : f32 to vector<8x128xf32>
    %808 = arith.minimumf %783, %807 : vector<8x128xf32>
    %809 = math.exp %808 : vector<8x128xf32>
    %810 = math.log1p %809 : vector<8x128xf32>
    %811 = arith.select %806, %783, %810 : vector<8x128xi1>, vector<8x128xf32>
    %cst_91 = arith.constant 2.000000e+01 : f32
    %812 = vector.broadcast %cst_91 : f32 to vector<8x128xf32>
    %813 = arith.cmpf ogt, %797, %812 : vector<8x128xf32>
    %cst_92 = arith.constant 2.000000e+01 : f32
    %814 = vector.broadcast %cst_92 : f32 to vector<8x128xf32>
    %815 = arith.minimumf %797, %814 : vector<8x128xf32>
    %816 = math.exp %815 : vector<8x128xf32>
    %817 = math.log1p %816 : vector<8x128xf32>
    %818 = arith.select %813, %797, %817 : vector<8x128xi1>, vector<8x128xf32>
    %c180 = arith.constant 180 : index
    %819 = memref.load %arg2[%c180] : memref<189xf32, #tpu.memory_space<smem>>
    %820 = vector.broadcast %819 : f32 to vector<8x128xf32>
    %821 = arith.mulf %741, %820 : vector<8x128xf32>
    %c181 = arith.constant 181 : index
    %822 = memref.load %arg2[%c181] : memref<189xf32, #tpu.memory_space<smem>>
    %823 = vector.broadcast %822 : f32 to vector<8x128xf32>
    %824 = arith.mulf %748, %823 : vector<8x128xf32>
    %825 = arith.addf %821, %824 : vector<8x128xf32>
    %c182 = arith.constant 182 : index
    %826 = memref.load %arg2[%c182] : memref<189xf32, #tpu.memory_space<smem>>
    %827 = vector.broadcast %826 : f32 to vector<8x128xf32>
    %828 = arith.mulf %755, %827 : vector<8x128xf32>
    %829 = arith.addf %825, %828 : vector<8x128xf32>
    %c39_93 = arith.constant 39 : index
    %830 = memref.load %arg3[%c39_93] : memref<42xf32, #tpu.memory_space<smem>>
    %831 = vector.broadcast %830 : f32 to vector<8x128xf32>
    %832 = arith.addf %829, %831 : vector<8x128xf32>
    %c183 = arith.constant 183 : index
    %833 = memref.load %arg2[%c183] : memref<189xf32, #tpu.memory_space<smem>>
    %834 = vector.broadcast %833 : f32 to vector<8x128xf32>
    %835 = arith.mulf %741, %834 : vector<8x128xf32>
    %c184 = arith.constant 184 : index
    %836 = memref.load %arg2[%c184] : memref<189xf32, #tpu.memory_space<smem>>
    %837 = vector.broadcast %836 : f32 to vector<8x128xf32>
    %838 = arith.mulf %748, %837 : vector<8x128xf32>
    %839 = arith.addf %835, %838 : vector<8x128xf32>
    %c185 = arith.constant 185 : index
    %840 = memref.load %arg2[%c185] : memref<189xf32, #tpu.memory_space<smem>>
    %841 = vector.broadcast %840 : f32 to vector<8x128xf32>
    %842 = arith.mulf %755, %841 : vector<8x128xf32>
    %843 = arith.addf %839, %842 : vector<8x128xf32>
    %c40_94 = arith.constant 40 : index
    %844 = memref.load %arg3[%c40_94] : memref<42xf32, #tpu.memory_space<smem>>
    %845 = vector.broadcast %844 : f32 to vector<8x128xf32>
    %846 = arith.addf %843, %845 : vector<8x128xf32>
    %c144 = arith.constant 144 : index
    %847 = memref.load %arg2[%c144] : memref<189xf32, #tpu.memory_space<smem>>
    %848 = vector.broadcast %847 : f32 to vector<8x128xf32>
    %849 = arith.mulf %741, %848 : vector<8x128xf32>
    %c145 = arith.constant 145 : index
    %850 = memref.load %arg2[%c145] : memref<189xf32, #tpu.memory_space<smem>>
    %851 = vector.broadcast %850 : f32 to vector<8x128xf32>
    %852 = arith.mulf %748, %851 : vector<8x128xf32>
    %853 = arith.addf %849, %852 : vector<8x128xf32>
    %c146 = arith.constant 146 : index
    %854 = memref.load %arg2[%c146] : memref<189xf32, #tpu.memory_space<smem>>
    %855 = vector.broadcast %854 : f32 to vector<8x128xf32>
    %856 = arith.mulf %755, %855 : vector<8x128xf32>
    %857 = arith.addf %853, %856 : vector<8x128xf32>
    %c33_95 = arith.constant 33 : index
    %858 = memref.load %arg3[%c33_95] : memref<42xf32, #tpu.memory_space<smem>>
    %859 = vector.broadcast %858 : f32 to vector<8x128xf32>
    %860 = arith.addf %857, %859 : vector<8x128xf32>
    %861 = arith.mulf %666, %804 : vector<8x128xf32>
    %862 = arith.mulf %677, %811 : vector<8x128xf32>
    %863 = arith.mulf %688, %818 : vector<8x128xf32>
    %c153 = arith.constant 153 : index
    %864 = memref.load %arg2[%c153] : memref<189xf32, #tpu.memory_space<smem>>
    %865 = vector.broadcast %864 : f32 to vector<8x128xf32>
    %866 = arith.mulf %861, %865 : vector<8x128xf32>
    %c154 = arith.constant 154 : index
    %867 = memref.load %arg2[%c154] : memref<189xf32, #tpu.memory_space<smem>>
    %868 = vector.broadcast %867 : f32 to vector<8x128xf32>
    %869 = arith.mulf %862, %868 : vector<8x128xf32>
    %870 = arith.addf %866, %869 : vector<8x128xf32>
    %c155 = arith.constant 155 : index
    %871 = memref.load %arg2[%c155] : memref<189xf32, #tpu.memory_space<smem>>
    %872 = vector.broadcast %871 : f32 to vector<8x128xf32>
    %873 = arith.mulf %863, %872 : vector<8x128xf32>
    %874 = arith.addf %870, %873 : vector<8x128xf32>
    %875 = arith.addf %860, %874 : vector<8x128xf32>
    %876 = arith.mulf %5, %832 : vector<8x128xf32>
    %877 = arith.mulf %7, %846 : vector<8x128xf32>
    %c171 = arith.constant 171 : index
    %878 = memref.load %arg2[%c171] : memref<189xf32, #tpu.memory_space<smem>>
    %879 = vector.broadcast %878 : f32 to vector<8x128xf32>
    %880 = arith.mulf %876, %879 : vector<8x128xf32>
    %c172 = arith.constant 172 : index
    %881 = memref.load %arg2[%c172] : memref<189xf32, #tpu.memory_space<smem>>
    %882 = vector.broadcast %881 : f32 to vector<8x128xf32>
    %883 = arith.mulf %877, %882 : vector<8x128xf32>
    %884 = arith.addf %880, %883 : vector<8x128xf32>
    %885 = arith.addf %875, %884 : vector<8x128xf32>
    %cst_96 = arith.constant 2.000000e+01 : f32
    %886 = vector.broadcast %cst_96 : f32 to vector<8x128xf32>
    %887 = arith.minimumf %885, %886 : vector<8x128xf32>
    %888 = math.exp %887 : vector<8x128xf32>
    %cst_97 = arith.constant 1.000000e+00 : f32
    %889 = vector.broadcast %cst_97 : f32 to vector<8x128xf32>
    %890 = arith.addf %889, %888 : vector<8x128xf32>
    %891 = tpu.reciprocal %890 : vector<8x128xf32> -> vector<8x128xf32>
    %892 = arith.mulf %888, %891 : vector<8x128xf32>
    %c171_98 = arith.constant 171 : index
    %893 = memref.load %arg2[%c171_98] : memref<189xf32, #tpu.memory_space<smem>>
    %894 = vector.broadcast %893 : f32 to vector<8x128xf32>
    %895 = arith.mulf %892, %894 : vector<8x128xf32>
    %c172_99 = arith.constant 172 : index
    %896 = memref.load %arg2[%c172_99] : memref<189xf32, #tpu.memory_space<smem>>
    %897 = vector.broadcast %896 : f32 to vector<8x128xf32>
    %898 = arith.mulf %892, %897 : vector<8x128xf32>
    %899 = arith.mulf %895, %832 : vector<8x128xf32>
    %900 = arith.mulf %898, %846 : vector<8x128xf32>
    %c153_100 = arith.constant 153 : index
    %901 = memref.load %arg2[%c153_100] : memref<189xf32, #tpu.memory_space<smem>>
    %902 = vector.broadcast %901 : f32 to vector<8x128xf32>
    %903 = arith.mulf %892, %902 : vector<8x128xf32>
    %c154_101 = arith.constant 154 : index
    %904 = memref.load %arg2[%c154_101] : memref<189xf32, #tpu.memory_space<smem>>
    %905 = vector.broadcast %904 : f32 to vector<8x128xf32>
    %906 = arith.mulf %892, %905 : vector<8x128xf32>
    %c155_102 = arith.constant 155 : index
    %907 = memref.load %arg2[%c155_102] : memref<189xf32, #tpu.memory_space<smem>>
    %908 = vector.broadcast %907 : f32 to vector<8x128xf32>
    %909 = arith.mulf %892, %908 : vector<8x128xf32>
    %910 = arith.mulf %903, %804 : vector<8x128xf32>
    %911 = arith.mulf %906, %811 : vector<8x128xf32>
    %912 = arith.mulf %909, %818 : vector<8x128xf32>
    %913 = arith.mulf %910, %670 : vector<8x128xf32>
    %914 = arith.mulf %911, %681 : vector<8x128xf32>
    %915 = arith.mulf %912, %692 : vector<8x128xf32>
    %c117_103 = arith.constant 117 : index
    %916 = memref.load %arg2[%c117_103] : memref<189xf32, #tpu.memory_space<smem>>
    %917 = vector.broadcast %916 : f32 to vector<8x128xf32>
    %918 = arith.mulf %913, %917 : vector<8x128xf32>
    %c120_104 = arith.constant 120 : index
    %919 = memref.load %arg2[%c120_104] : memref<189xf32, #tpu.memory_space<smem>>
    %920 = vector.broadcast %919 : f32 to vector<8x128xf32>
    %921 = arith.mulf %914, %920 : vector<8x128xf32>
    %922 = arith.addf %918, %921 : vector<8x128xf32>
    %c123_105 = arith.constant 123 : index
    %923 = memref.load %arg2[%c123_105] : memref<189xf32, #tpu.memory_space<smem>>
    %924 = vector.broadcast %923 : f32 to vector<8x128xf32>
    %925 = arith.mulf %915, %924 : vector<8x128xf32>
    %926 = arith.addf %922, %925 : vector<8x128xf32>
    %c118_106 = arith.constant 118 : index
    %927 = memref.load %arg2[%c118_106] : memref<189xf32, #tpu.memory_space<smem>>
    %928 = vector.broadcast %927 : f32 to vector<8x128xf32>
    %929 = arith.mulf %913, %928 : vector<8x128xf32>
    %c121_107 = arith.constant 121 : index
    %930 = memref.load %arg2[%c121_107] : memref<189xf32, #tpu.memory_space<smem>>
    %931 = vector.broadcast %930 : f32 to vector<8x128xf32>
    %932 = arith.mulf %914, %931 : vector<8x128xf32>
    %933 = arith.addf %929, %932 : vector<8x128xf32>
    %c124_108 = arith.constant 124 : index
    %934 = memref.load %arg2[%c124_108] : memref<189xf32, #tpu.memory_space<smem>>
    %935 = vector.broadcast %934 : f32 to vector<8x128xf32>
    %936 = arith.mulf %915, %935 : vector<8x128xf32>
    %937 = arith.addf %933, %936 : vector<8x128xf32>
    %938 = arith.mulf %926, %538 : vector<8x128xf32>
    %939 = arith.mulf %937, %552 : vector<8x128xf32>
    %940 = arith.addf %899, %938 : vector<8x128xf32>
    %941 = arith.addf %900, %939 : vector<8x128xf32>
    %c99_109 = arith.constant 99 : index
    %942 = memref.load %arg2[%c99_109] : memref<189xf32, #tpu.memory_space<smem>>
    %943 = vector.broadcast %942 : f32 to vector<8x128xf32>
    %944 = arith.mulf %913, %943 : vector<8x128xf32>
    %c102_110 = arith.constant 102 : index
    %945 = memref.load %arg2[%c102_110] : memref<189xf32, #tpu.memory_space<smem>>
    %946 = vector.broadcast %945 : f32 to vector<8x128xf32>
    %947 = arith.mulf %914, %946 : vector<8x128xf32>
    %948 = arith.addf %944, %947 : vector<8x128xf32>
    %c105_111 = arith.constant 105 : index
    %949 = memref.load %arg2[%c105_111] : memref<189xf32, #tpu.memory_space<smem>>
    %950 = vector.broadcast %949 : f32 to vector<8x128xf32>
    %951 = arith.mulf %915, %950 : vector<8x128xf32>
    %952 = arith.addf %948, %951 : vector<8x128xf32>
    %c100_112 = arith.constant 100 : index
    %953 = memref.load %arg2[%c100_112] : memref<189xf32, #tpu.memory_space<smem>>
    %954 = vector.broadcast %953 : f32 to vector<8x128xf32>
    %955 = arith.mulf %913, %954 : vector<8x128xf32>
    %c103_113 = arith.constant 103 : index
    %956 = memref.load %arg2[%c103_113] : memref<189xf32, #tpu.memory_space<smem>>
    %957 = vector.broadcast %956 : f32 to vector<8x128xf32>
    %958 = arith.mulf %914, %957 : vector<8x128xf32>
    %959 = arith.addf %955, %958 : vector<8x128xf32>
    %c106_114 = arith.constant 106 : index
    %960 = memref.load %arg2[%c106_114] : memref<189xf32, #tpu.memory_space<smem>>
    %961 = vector.broadcast %960 : f32 to vector<8x128xf32>
    %962 = arith.mulf %915, %961 : vector<8x128xf32>
    %963 = arith.addf %959, %962 : vector<8x128xf32>
    %c101_115 = arith.constant 101 : index
    %964 = memref.load %arg2[%c101_115] : memref<189xf32, #tpu.memory_space<smem>>
    %965 = vector.broadcast %964 : f32 to vector<8x128xf32>
    %966 = arith.mulf %913, %965 : vector<8x128xf32>
    %c104_116 = arith.constant 104 : index
    %967 = memref.load %arg2[%c104_116] : memref<189xf32, #tpu.memory_space<smem>>
    %968 = vector.broadcast %967 : f32 to vector<8x128xf32>
    %969 = arith.mulf %914, %968 : vector<8x128xf32>
    %970 = arith.addf %966, %969 : vector<8x128xf32>
    %c107_117 = arith.constant 107 : index
    %971 = memref.load %arg2[%c107_117] : memref<189xf32, #tpu.memory_space<smem>>
    %972 = vector.broadcast %971 : f32 to vector<8x128xf32>
    %973 = arith.mulf %915, %972 : vector<8x128xf32>
    %974 = arith.addf %970, %973 : vector<8x128xf32>
    %975 = arith.mulf %952, %510 : vector<8x128xf32>
    %976 = arith.mulf %963, %517 : vector<8x128xf32>
    %977 = arith.mulf %974, %524 : vector<8x128xf32>
    %978 = arith.mulf %975, %376 : vector<8x128xf32>
    %979 = arith.mulf %976, %387 : vector<8x128xf32>
    %980 = arith.mulf %977, %398 : vector<8x128xf32>
    %c63_118 = arith.constant 63 : index
    %981 = memref.load %arg2[%c63_118] : memref<189xf32, #tpu.memory_space<smem>>
    %982 = vector.broadcast %981 : f32 to vector<8x128xf32>
    %983 = arith.mulf %978, %982 : vector<8x128xf32>
    %c66_119 = arith.constant 66 : index
    %984 = memref.load %arg2[%c66_119] : memref<189xf32, #tpu.memory_space<smem>>
    %985 = vector.broadcast %984 : f32 to vector<8x128xf32>
    %986 = arith.mulf %979, %985 : vector<8x128xf32>
    %987 = arith.addf %983, %986 : vector<8x128xf32>
    %c69_120 = arith.constant 69 : index
    %988 = memref.load %arg2[%c69_120] : memref<189xf32, #tpu.memory_space<smem>>
    %989 = vector.broadcast %988 : f32 to vector<8x128xf32>
    %990 = arith.mulf %980, %989 : vector<8x128xf32>
    %991 = arith.addf %987, %990 : vector<8x128xf32>
    %c64_121 = arith.constant 64 : index
    %992 = memref.load %arg2[%c64_121] : memref<189xf32, #tpu.memory_space<smem>>
    %993 = vector.broadcast %992 : f32 to vector<8x128xf32>
    %994 = arith.mulf %978, %993 : vector<8x128xf32>
    %c67_122 = arith.constant 67 : index
    %995 = memref.load %arg2[%c67_122] : memref<189xf32, #tpu.memory_space<smem>>
    %996 = vector.broadcast %995 : f32 to vector<8x128xf32>
    %997 = arith.mulf %979, %996 : vector<8x128xf32>
    %998 = arith.addf %994, %997 : vector<8x128xf32>
    %c70_123 = arith.constant 70 : index
    %999 = memref.load %arg2[%c70_123] : memref<189xf32, #tpu.memory_space<smem>>
    %1000 = vector.broadcast %999 : f32 to vector<8x128xf32>
    %1001 = arith.mulf %980, %1000 : vector<8x128xf32>
    %1002 = arith.addf %998, %1001 : vector<8x128xf32>
    %1003 = arith.mulf %991, %244 : vector<8x128xf32>
    %1004 = arith.mulf %1002, %258 : vector<8x128xf32>
    %1005 = arith.addf %940, %1003 : vector<8x128xf32>
    %1006 = arith.addf %941, %1004 : vector<8x128xf32>
    %c45_124 = arith.constant 45 : index
    %1007 = memref.load %arg2[%c45_124] : memref<189xf32, #tpu.memory_space<smem>>
    %1008 = vector.broadcast %1007 : f32 to vector<8x128xf32>
    %1009 = arith.mulf %978, %1008 : vector<8x128xf32>
    %c48_125 = arith.constant 48 : index
    %1010 = memref.load %arg2[%c48_125] : memref<189xf32, #tpu.memory_space<smem>>
    %1011 = vector.broadcast %1010 : f32 to vector<8x128xf32>
    %1012 = arith.mulf %979, %1011 : vector<8x128xf32>
    %1013 = arith.addf %1009, %1012 : vector<8x128xf32>
    %c51_126 = arith.constant 51 : index
    %1014 = memref.load %arg2[%c51_126] : memref<189xf32, #tpu.memory_space<smem>>
    %1015 = vector.broadcast %1014 : f32 to vector<8x128xf32>
    %1016 = arith.mulf %980, %1015 : vector<8x128xf32>
    %1017 = arith.addf %1013, %1016 : vector<8x128xf32>
    %c46_127 = arith.constant 46 : index
    %1018 = memref.load %arg2[%c46_127] : memref<189xf32, #tpu.memory_space<smem>>
    %1019 = vector.broadcast %1018 : f32 to vector<8x128xf32>
    %1020 = arith.mulf %978, %1019 : vector<8x128xf32>
    %c49_128 = arith.constant 49 : index
    %1021 = memref.load %arg2[%c49_128] : memref<189xf32, #tpu.memory_space<smem>>
    %1022 = vector.broadcast %1021 : f32 to vector<8x128xf32>
    %1023 = arith.mulf %979, %1022 : vector<8x128xf32>
    %1024 = arith.addf %1020, %1023 : vector<8x128xf32>
    %c52_129 = arith.constant 52 : index
    %1025 = memref.load %arg2[%c52_129] : memref<189xf32, #tpu.memory_space<smem>>
    %1026 = vector.broadcast %1025 : f32 to vector<8x128xf32>
    %1027 = arith.mulf %980, %1026 : vector<8x128xf32>
    %1028 = arith.addf %1024, %1027 : vector<8x128xf32>
    %c47_130 = arith.constant 47 : index
    %1029 = memref.load %arg2[%c47_130] : memref<189xf32, #tpu.memory_space<smem>>
    %1030 = vector.broadcast %1029 : f32 to vector<8x128xf32>
    %1031 = arith.mulf %978, %1030 : vector<8x128xf32>
    %c50_131 = arith.constant 50 : index
    %1032 = memref.load %arg2[%c50_131] : memref<189xf32, #tpu.memory_space<smem>>
    %1033 = vector.broadcast %1032 : f32 to vector<8x128xf32>
    %1034 = arith.mulf %979, %1033 : vector<8x128xf32>
    %1035 = arith.addf %1031, %1034 : vector<8x128xf32>
    %c53_132 = arith.constant 53 : index
    %1036 = memref.load %arg2[%c53_132] : memref<189xf32, #tpu.memory_space<smem>>
    %1037 = vector.broadcast %1036 : f32 to vector<8x128xf32>
    %1038 = arith.mulf %980, %1037 : vector<8x128xf32>
    %1039 = arith.addf %1035, %1038 : vector<8x128xf32>
    %1040 = arith.mulf %1017, %216 : vector<8x128xf32>
    %1041 = arith.mulf %1028, %223 : vector<8x128xf32>
    %1042 = arith.mulf %1039, %230 : vector<8x128xf32>
    %1043 = arith.mulf %1040, %94 : vector<8x128xf32>
    %1044 = arith.mulf %1041, %105 : vector<8x128xf32>
    %1045 = arith.mulf %1042, %116 : vector<8x128xf32>
    %c9_133 = arith.constant 9 : index
    %1046 = memref.load %arg2[%c9_133] : memref<189xf32, #tpu.memory_space<smem>>
    %1047 = vector.broadcast %1046 : f32 to vector<8x128xf32>
    %1048 = arith.mulf %1043, %1047 : vector<8x128xf32>
    %c12_134 = arith.constant 12 : index
    %1049 = memref.load %arg2[%c12_134] : memref<189xf32, #tpu.memory_space<smem>>
    %1050 = vector.broadcast %1049 : f32 to vector<8x128xf32>
    %1051 = arith.mulf %1044, %1050 : vector<8x128xf32>
    %1052 = arith.addf %1048, %1051 : vector<8x128xf32>
    %c15_135 = arith.constant 15 : index
    %1053 = memref.load %arg2[%c15_135] : memref<189xf32, #tpu.memory_space<smem>>
    %1054 = vector.broadcast %1053 : f32 to vector<8x128xf32>
    %1055 = arith.mulf %1045, %1054 : vector<8x128xf32>
    %1056 = arith.addf %1052, %1055 : vector<8x128xf32>
    %c10_136 = arith.constant 10 : index
    %1057 = memref.load %arg2[%c10_136] : memref<189xf32, #tpu.memory_space<smem>>
    %1058 = vector.broadcast %1057 : f32 to vector<8x128xf32>
    %1059 = arith.mulf %1043, %1058 : vector<8x128xf32>
    %c13_137 = arith.constant 13 : index
    %1060 = memref.load %arg2[%c13_137] : memref<189xf32, #tpu.memory_space<smem>>
    %1061 = vector.broadcast %1060 : f32 to vector<8x128xf32>
    %1062 = arith.mulf %1044, %1061 : vector<8x128xf32>
    %1063 = arith.addf %1059, %1062 : vector<8x128xf32>
    %c16_138 = arith.constant 16 : index
    %1064 = memref.load %arg2[%c16_138] : memref<189xf32, #tpu.memory_space<smem>>
    %1065 = vector.broadcast %1064 : f32 to vector<8x128xf32>
    %1066 = arith.mulf %1045, %1065 : vector<8x128xf32>
    %1067 = arith.addf %1063, %1066 : vector<8x128xf32>
    %1068 = arith.mulf %1056, %17 : vector<8x128xf32>
    %1069 = arith.mulf %1067, %27 : vector<8x128xf32>
    %1070 = arith.addf %1005, %1068 : vector<8x128xf32>
    %1071 = arith.addf %1006, %1069 : vector<8x128xf32>
    %c0_139 = arith.constant 0 : index
    %c0_140 = arith.constant 0 : index
    %c0_141 = arith.constant 0 : index
    %1072 = vector.load %arg4[%c0_139, %c0_140, %c0_141] : memref<2x8x128xf32, #tpu.memory_space<vmem>>, vector<1x8x128xf32>
    %1073 = vector.shape_cast %1072 : vector<1x8x128xf32> to vector<8x128xf32>
    %1074 = vector.shape_cast %1070 : vector<8x128xf32> to vector<1x8x128xf32>
    tpu.vector_store %arg4[%c0_139, %c0_140, %c0_141], %1074 {strides = array<i32>} : memref<2x8x128xf32, #tpu.memory_space<vmem>>, vector<1x8x128xf32>,
    %c1_142 = arith.constant 1 : index
    %c0_143 = arith.constant 0 : index
    %c0_144 = arith.constant 0 : index
    %1075 = vector.load %arg4[%c1_142, %c0_143, %c0_144] : memref<2x8x128xf32, #tpu.memory_space<vmem>>, vector<1x8x128xf32>
    %1076 = vector.shape_cast %1075 : vector<1x8x128xf32> to vector<8x128xf32>
    %1077 = vector.shape_cast %1071 : vector<8x128xf32> to vector<1x8x128xf32>
    tpu.vector_store %arg4[%c1_142, %c0_143, %c0_144], %1077 {strides = array<i32>} : memref<2x8x128xf32, #tpu.memory_space<vmem>>, vector<1x8x128xf32>,
    return
  }
  func.func @transform_0(%arg0: i32) -> (i32, i32, i32) {
    %c0_i32 = arith.constant 0 : i32
    %c0_i32_0 = arith.constant 0 : i32
    %c0_i32_1 = arith.constant 0 : i32
    return %c0_i32, %arg0, %c0_i32_0 : i32, i32, i32
  }
  func.func @transform_1(%arg0: i32) -> i32 {
    %c0_i32 = arith.constant 0 : i32
    %c0_i32_0 = arith.constant 0 : i32
    return %c0_i32 : i32
  }
  func.func @transform_2(%arg0: i32) -> i32 {
    %c0_i32 = arith.constant 0 : i32
    %c0_i32_0 = arith.constant 0 : i32
    return %c0_i32 : i32
  }
  func.func @transform_3(%arg0: i32) -> (i32, i32, i32) {
    %c0_i32 = arith.constant 0 : i32
    %c0_i32_0 = arith.constant 0 : i32
    %c0_i32_1 = arith.constant 0 : i32
    return %c0_i32, %arg0, %c0_i32_0 : i32, i32, i32
  }
}

</mosaic_0001>

<llo_original>
// kernel: gradient_dynamics.1
$region0: #{gradient_dynamics.1}
  #allocation0 [shape = 'u32[]', space=smem, size = 0x4, offset = 0x4, fixed_abs, tag = 'smem constant byte address 0x4 - core index']
  #allocation1 [shape = 'u32[144,128]{1,0:T(1,128)}', space=vmem, size = 0x12000, scoped, tag = 'internal scratch']
  %s0 = inlined_call_operand.vmem [shape: f32[2,8,128], index: 0, kind: input, shape index: {}]
  %s1 = inlined_call_operand.vmem [shape: f32[189], index: 1, kind: input, shape index: {}]
  %s2 = inlined_call_operand.vmem [shape: f32[42], index: 2, kind: input, shape index: {}]
  %s3 = inlined_call_operand.vmem [shape: f32[2,8,128], index: 3, kind: output, shape index: {}]
  %s4 = sld [smem:[#allocation0]]
  $region30: #{gradient_dynamics.1} parent=0
    _
  %s6 = ssub.s32 1, %s4
  %s7 = scalar_select 0, %s6, %s4
  $region1: #{gradient_dynamics.1} parent=0
    #allocation2 [shape = 'u8[1024]{0}', space=smem, size = 0x400, scoped, tag = 'input window, operand 1, single buffered']
    #allocation3 [shape = 's32[1]{0}', space=sflag, size = 0x4, scoped, tag = 'scoped memory for gradient_dynamics.1']
    #allocation4 [shape = 'u8[512]{0}', space=smem, size = 0x200, scoped, tag = 'input window, operand 2, single buffered']
    #allocation5 [shape = 's32[1]{0}', space=sflag, size = 0x4, scoped, tag = 'scoped memory for gradient_dynamics.1']
    %8 = vsyncpa [#allocation3], 0
    %9 = vsyncpa [#allocation5], 0
    // Predicated region
    $region2: #{gradient_dynamics.1} parent=1 // pred_check
      _
    $region3: #{gradient_dynamics.1} parent=1 // pred_check_branch
      %11 = sbr.rel (0) target = $region5
    $region4: #{gradient_dynamics.1} parent=1 // pred_region
      _
    $region5: #{gradient_dynamics.1} parent=1 // pred_fallthru
      _
    // Predicated region
    $region6: #{gradient_dynamics.1} parent=1 // pred_check
      _
    $region7: #{gradient_dynamics.1} parent=1 // pred_check_branch
      %13 = sbr.rel (0) target = $region9
    $region8: #{gradient_dynamics.1} parent=1 // pred_region
      %s15 = ssub.s32 32, 32
      %16 = vsyncadd [#allocation3], %s15
      %s18 = sshll.u32 %s1, 4
      %s19 = int_to_ptr.vmem [resolvable:$true] %s18
      %21 = dma.vmem_to_smem %s19, 32, [#allocation2], [#allocation3]
    $region9: #{gradient_dynamics.1} parent=1 // pred_fallthru
      _
    // Predicated region
    $region10: #{gradient_dynamics.1} parent=1 // pred_check
      _
    $region11: #{gradient_dynamics.1} parent=1 // pred_check_branch
      %23 = sbr.rel (0) target = $region13
    $region12: #{gradient_dynamics.1} parent=1 // pred_region
      %s25 = ssub.s32 16, 16
      %26 = vsyncadd [#allocation5], %s25
      %s28 = sshll.u32 %s2, 4
      %s29 = int_to_ptr.vmem [resolvable:$true] %s28
      %31 = dma.vmem_to_smem %s29, 16, [#allocation4], [#allocation5]
    $region13: #{gradient_dynamics.1} parent=1 // pred_fallthru
      _
    // Predicated region
    $region14: #{gradient_dynamics.1} parent=1 // pred_check
      _
    $region15: #{gradient_dynamics.1} parent=1 // pred_check_branch
      %33 = sbr.rel (0) target = $region17
    $region16: #{gradient_dynamics.1} parent=1 // pred_region
      %34 = dma.done [#allocation3], 32
    $region17: #{gradient_dynamics.1} parent=1 // pred_fallthru
      _
    // Predicated region
    $region18: #{gradient_dynamics.1} parent=1 // pred_check
      _
    $region19: #{gradient_dynamics.1} parent=1 // pred_check_branch
      %36 = sbr.rel (0) target = $region21
    $region20: #{gradient_dynamics.1} parent=1 // pred_region
      %37 = dma.done [#allocation5], 16
    $region21: #{gradient_dynamics.1} parent=1 // pred_fallthru
      _
    %38 = sfence
    %v39 = vld [vmem:[%s0] sm:$0xff]
    %s40 = scalar_lea.vmem %s0, 8
    %v41 = vld [vmem:[%s40] sm:$0xff]
    %v42 = vsub.f32 0.0, %v39
    %v43 = vsub.f32 0.0, %v41
    %s44 = sld [smem:[#allocation2 + $0x12]]
    %v45 = vstv %s44
    %v46 = vmul.f32 %v39, %v45
    %s47 = sld [smem:[#allocation2 + $0x13]]
    %v48 = vstv %s47
    %v49 = vmul.f32 %v41, %v48
    %v50 = vadd.f32 %v46, %v49
    %s51 = sld [smem:[#allocation4 + $0x3]]
    %v52 = vstv %s51
    %v53 = vadd.f32 %v50, %v52
    %s54 = sld [smem:[#allocation2 + $0x15]]
    %v55 = vstv %s54
    %v56 = vmul.f32 %v39, %v55
    %s57 = sld [smem:[#allocation2 + $0x16]]
    %v58 = vstv %s57
    %v59 = vmul.f32 %v41, %v58
    %v60 = vadd.f32 %v56, %v59
    %s61 = sld [smem:[#allocation4 + $0x4]]
    %v62 = vstv %s61
    %v63 = vadd.f32 %v60, %v62
    %s64 = sld [smem:[#allocation2]]
    %v65 = vstv %s64
    %v66 = vmul.f32 %v39, %v65
    %s67 = sld [smem:[#allocation2 + $0x1]]
    %v68 = vstv %s67
    %v69 = vmul.f32 %v41, %v68
    %v70 = vadd.f32 %v66, %v69
    %s71 = sld [smem:[#allocation4]]
    %v72 = vstv %s71
    %v73 = vadd.f32 %v70, %v72
    %s74 = sld [smem:[#allocation2 + $0x3]]
    %v75 = vstv %s74
    %v76 = vmul.f32 %v39, %v75
    %s77 = sld [smem:[#allocation2 + $0x4]]
    %v78 = vstv %s77
    %v79 = vmul.f32 %v41, %v78
    %v80 = vadd.f32 %v76, %v79
    %s81 = sld [smem:[#allocation4 + $0x1]]
    %v82 = vstv %s81
    %v83 = vadd.f32 %v80, %v82
    %s84 = sld [smem:[#allocation2 + $0x6]]
    %v85 = vstv %s84
    %v86 = vmul.f32 %v39, %v85
    %s87 = sld [smem:[#allocation2 + $0x7]]
    %v88 = vstv %s87
    %v89 = vmul.f32 %v41, %v88
    %v90 = vadd.f32 %v86, %v89
    %s91 = sld [smem:[#allocation4 + $0x2]]
    %v92 = vstv %s91
    %v93 = vadd.f32 %v90, %v92
    %v94 = vmul.f32 %v42, %v53
    %v95 = vmul.f32 %v43, %v63
    %s96 = sld [smem:[#allocation2 + $0x9]]
    %v97 = vstv %s96
    %v98 = vmul.f32 %v94, %v97
    %s99 = sld [smem:[#allocation2 + $0xa]]
    %v100 = vstv %s99
    %v101 = vmul.f32 %v95, %v100
    %v102 = vadd.f32 %v98, %v101
    %s103 = sld [smem:[#allocation2 + $0xc]]
    %v104 = vstv %s103
    %v105 = vmul.f32 %v94, %v104
    %s106 = sld [smem:[#allocation2 + $0xd]]
    %v107 = vstv %s106
    %v108 = vmul.f32 %v95, %v107
    %v109 = vadd.f32 %v105, %v108
    %s110 = sld [smem:[#allocation2 + $0xf]]
    %v111 = vstv %s110
    %v112 = vmul.f32 %v94, %v111
    %s113 = sld [smem:[#allocation2 + $0x10]]
    %v114 = vstv %s113
    %v115 = vmul.f32 %v95, %v114
    %v116 = vadd.f32 %v112, %v115
    %v117 = vadd.f32 %v73, %v102
    %v118 = vadd.f32 %v83, %v109
    %v119 = vadd.f32 %v93, %v116
    %v120 = vmin.f32 %v117, 20.0
    %v121 = vmul.f32 %v120, 1.442695
    %v122 = vpow.pop %v121
    %vm123 = vcmp.gt.f32.partialorder %v117, 20.0
    %v124 = vadd.f32 %v122, 1.0
    %v125 = vlog2.pop %v124
    %v126 = vmul.f32 %v125, 0.6931472
    %v127 = vmul.f32 -0.5, %v122
    %v128 = vadd.f32 %v127, 1.0
    %v129 = vmul.f32 %v128, %v122
    %v130 = vand.u32 2147483647, %v122
    %vm131 = vcmp.lt.f32.partialorder %v130, 0.0004427343
    %v132 = vsel %vm131, %v129, %v126
    %v133 = vsel %vm123, %v117, %v132
    %v134 = vadd.f32 %v122, 1.0
    %v135 = vrcp.pop %v134
    %v136 = vmul.f32 %v122, %v135
    %v137 = vmin.f32 %v118, 20.0
    %v138 = vmul.f32 %v137, 1.442695
    %v139 = vpow.pop %v138
    %vm140 = vcmp.gt.f32.partialorder %v118, 20.0
    %v141 = vadd.f32 %v139, 1.0
    %v142 = vlog2.pop %v141
    %v143 = vmul.f32 %v142, 0.6931472
    %v144 = vmul.f32 -0.5, %v139
    %v145 = vadd.f32 %v144, 1.0
    %v146 = vmul.f32 %v145, %v139
    %v147 = vand.u32 2147483647, %v139
    %vm148 = vcmp.lt.f32.partialorder %v147, 0.0004427343
    %v149 = vsel %vm148, %v146, %v143
    %v150 = vsel %vm140, %v118, %v149
    %v151 = vadd.f32 %v139, 1.0
    %v152 = vrcp.pop %v151
    %v153 = vmul.f32 %v139, %v152
    %v154 = vmin.f32 %v119, 20.0
    %v155 = vmul.f32 %v154, 1.442695
    %v156 = vpow.pop %v155
    %vm157 = vcmp.gt.f32.partialorder %v119, 20.0
    %v158 = vadd.f32 %v156, 1.0
    %v159 = vlog2.pop %v158
    %v160 = vmul.f32 %v159, 0.6931472
    %v161 = vmul.f32 -0.5, %v156
    %v162 = vadd.f32 %v161, 1.0
    %v163 = vmul.f32 %v162, %v156
    %v164 = vand.u32 2147483647, %v156
    %vm165 = vcmp.lt.f32.partialorder %v164, 0.0004427343
    %v166 = vsel %vm165, %v163, %v160
    %v167 = vsel %vm157, %v119, %v166
    %v168 = vadd.f32 %v156, 1.0
    %v169 = vrcp.pop %v168
    %v170 = vmul.f32 %v156, %v169
    %s171 = sld [smem:[#allocation2 + $0x1b]]
    %v172 = vstv %s171
    %v173 = vmul.f32 %v39, %v172
    %s174 = sld [smem:[#allocation2 + $0x1c]]
    %v175 = vstv %s174
    %v176 = vmul.f32 %v41, %v175
    %v177 = vadd.f32 %v173, %v176
    %s178 = sld [smem:[#allocation4 + $0x6]]
    %v179 = vstv %s178
    %v180 = vadd.f32 %v177, %v179
    %s181 = sld [smem:[#allocation2 + $0x1e]]
    %v182 = vstv %s181
    %v183 = vmul.f32 %v39, %v182
    %s184 = sld [smem:[#allocation2 + $0x1f]]
    %v185 = vstv %s184
    %v186 = vmul.f32 %v41, %v185
    %v187 = vadd.f32 %v183, %v186
    %s188 = sld [smem:[#allocation4 + $0x7]]
    %v189 = vstv %s188
    %v190 = vadd.f32 %v187, %v189
    %s191 = sld [smem:[#allocation2 + $0x21]]
    %v192 = vstv %s191
    %v193 = vmul.f32 %v39, %v192
    %s194 = sld [smem:[#allocation2 + $0x22]]
    %v195 = vstv %s194
    %v196 = vmul.f32 %v41, %v195
    %v197 = vadd.f32 %v193, %v196
    %s198 = sld [smem:[#allocation4 + $0x8]]
    %v199 = vstv %s198
    %v200 = vadd.f32 %v197, %v199
    %vm201 = vcmp.gt.f32.partialorder %v180, 20.0
    %v202 = vmin.f32 %v180, 20.0
    %v203 = vmul.f32 %v202, 1.442695
    %v204 = vpow.pop %v203
    %v205 = vadd.f32 %v204, 1.0
    %v206 = vlog2.pop %v205
    %v207 = vmul.f32 %v206, 0.6931472
    %v208 = vmul.f32 -0.5, %v204
    %v209 = vadd.f32 %v208, 1.0
    %v210 = vmul.f32 %v209, %v204
    %v211 = vand.u32 2147483647, %v204
    %vm212 = vcmp.lt.f32.partialorder %v211, 0.0004427343
    %v213 = vsel %vm212, %v210, %v207
    %v214 = vsel %vm201, %v180, %v213
    %vm215 = vcmp.gt.f32.partialorder %v190, 20.0
    %v216 = vmin.f32 %v190, 20.0
    %v217 = vmul.f32 %v216, 1.442695
    %v218 = vpow.pop %v217
    %v219 = vadd.f32 %v218, 1.0
    %v220 = vlog2.pop %v219
    %v221 = vmul.f32 %v220, 0.6931472
    %v222 = vmul.f32 -0.5, %v218
    %v223 = vadd.f32 %v222, 1.0
    %v224 = vmul.f32 %v223, %v218
    %v225 = vand.u32 2147483647, %v218
    %vm226 = vcmp.lt.f32.partialorder %v225, 0.0004427343
    %v227 = vsel %vm226, %v224, %v221
    %v228 = vsel %vm215, %v190, %v227
    %vm229 = vcmp.gt.f32.partialorder %v200, 20.0
    %v230 = vmin.f32 %v200, 20.0
    %v231 = vmul.f32 %v230, 1.442695
    %v232 = vpow.pop %v231
    %v233 = vadd.f32 %v232, 1.0
    %v234 = vlog2.pop %v233
    %v235 = vmul.f32 %v234, 0.6931472
    %v236 = vmul.f32 -0.5, %v232
    %v237 = vadd.f32 %v236, 1.0
    %v238 = vmul.f32 %v237, %v232
    %v239 = vand.u32 2147483647, %v232
    %vm240 = vcmp.lt.f32.partialorder %v239, 0.0004427343
    %v241 = vsel %vm240, %v238, %v235
    %v242 = vsel %vm229, %v200, %v241
    %s243 = sld [smem:[#allocation2 + $0x36]]
    %v244 = vstv %s243
    %v245 = vmul.f32 %v214, %v244
    %s246 = sld [smem:[#allocation2 + $0x37]]
    %v247 = vstv %s246
    %v248 = vmul.f32 %v228, %v247
    %v249 = vadd.f32 %v245, %v248
    %s250 = sld [smem:[#allocation2 + $0x38]]
    %v251 = vstv %s250
    %v252 = vmul.f32 %v242, %v251
    %v253 = vadd.f32 %v249, %v252
    %s254 = sld [smem:[#allocation4 + $0xc]]
    %v255 = vstv %s254
    %v256 = vadd.f32 %v253, %v255
    %s257 = sld [smem:[#allocation2 + $0x39]]
    %v258 = vstv %s257
    %v259 = vmul.f32 %v214, %v258
    %s260 = sld [smem:[#allocation2 + $0x3a]]
    %v261 = vstv %s260
    %v262 = vmul.f32 %v228, %v261
    %v263 = vadd.f32 %v259, %v262
    %s264 = sld [smem:[#allocation2 + $0x3b]]
    %v265 = vstv %s264
    %v266 = vmul.f32 %v242, %v265
    %v267 = vadd.f32 %v263, %v266
    %s268 = sld [smem:[#allocation4 + $0xd]]
    %v269 = vstv %s268
    %v270 = vadd.f32 %v267, %v269
    %s271 = sld [smem:[#allocation2 + $0x3c]]
    %v272 = vstv %s271
    %v273 = vmul.f32 %v214, %v272
    %s274 = sld [smem:[#allocation2 + $0x3d]]
    %v275 = vstv %s274
    %v276 = vmul.f32 %v228, %v275
    %v277 = vadd.f32 %v273, %v276
    %s278 = sld [smem:[#allocation2 + $0x3e]]
    %v279 = vstv %s278
    %v280 = vmul.f32 %v242, %v279
    %v281 = vadd.f32 %v277, %v280
    %s282 = sld [smem:[#allocation4 + $0xe]]
    %v283 = vstv %s282
    %v284 = vadd.f32 %v281, %v283
    %vm285 = vcmp.gt.f32.partialorder %v256, 20.0
    %v286 = vmin.f32 %v256, 20.0
    %v287 = vmul.f32 %v286, 1.442695
    %v288 = vpow.pop %v287
    %v289 = vadd.f32 %v288, 1.0
    %v290 = vlog2.pop %v289
    %v291 = vmul.f32 %v290, 0.6931472
    %v292 = vmul.f32 -0.5, %v288
    %v293 = vadd.f32 %v292, 1.0
    %v294 = vmul.f32 %v293, %v288
    %v295 = vand.u32 2147483647, %v288
    %vm296 = vcmp.lt.f32.partialorder %v295, 0.0004427343
    %v297 = vsel %vm296, %v294, %v291
    %v298 = vsel %vm285, %v256, %v297
    %vm299 = vcmp.gt.f32.partialorder %v270, 20.0
    %v300 = vmin.f32 %v270, 20.0
    %v301 = vmul.f32 %v300, 1.442695
    %v302 = vpow.pop %v301
    %v303 = vadd.f32 %v302, 1.0
    %v304 = vlog2.pop %v303
    %v305 = vmul.f32 %v304, 0.6931472
    %v306 = vmul.f32 -0.5, %v302
    %v307 = vadd.f32 %v306, 1.0
    %v308 = vmul.f32 %v307, %v302
    %v309 = vand.u32 2147483647, %v302
    %vm310 = vcmp.lt.f32.partialorder %v309, 0.0004427343
    %v311 = vsel %vm310, %v308, %v305
    %v312 = vsel %vm299, %v270, %v311
    %vm313 = vcmp.gt.f32.partialorder %v284, 20.0
    %v314 = vmin.f32 %v284, 20.0
    %v315 = vmul.f32 %v314, 1.442695
    %v316 = vpow.pop %v315
    %v317 = vadd.f32 %v316, 1.0
    %v318 = vlog2.pop %v317
    %v319 = vmul.f32 %v318, 0.6931472
    %v320 = vmul.f32 -0.5, %v316
    %v321 = vadd.f32 %v320, 1.0
    %v322 = vmul.f32 %v321, %v316
    %v323 = vand.u32 2147483647, %v316
    %vm324 = vcmp.lt.f32.partialorder %v323, 0.0004427343
    %v325 = vsel %vm324, %v322, %v319
    %v326 = vsel %vm313, %v284, %v325
    %s327 = sld [smem:[#allocation2 + $0x48]]
    %v328 = vstv %s327
    %v329 = vmul.f32 %v214, %v328
    %s330 = sld [smem:[#allocation2 + $0x49]]
    %v331 = vstv %s330
    %v332 = vmul.f32 %v228, %v331
    %v333 = vadd.f32 %v329, %v332
    %s334 = sld [smem:[#allocation2 + $0x4a]]
    %v335 = vstv %s334
    %v336 = vmul.f32 %v242, %v335
    %v337 = vadd.f32 %v333, %v336
    %s338 = sld [smem:[#allocation4 + $0xf]]
    %v339 = vstv %s338
    %v340 = vadd.f32 %v337, %v339
    %s341 = sld [smem:[#allocation2 + $0x4b]]
    %v342 = vstv %s341
    %v343 = vmul.f32 %v214, %v342
    %s344 = sld [smem:[#allocation2 + $0x4c]]
    %v345 = vstv %s344
    %v346 = vmul.f32 %v228, %v345
    %v347 = vadd.f32 %v343, %v346
    %s348 = sld [smem:[#allocation2 + $0x4d]]
    %v349 = vstv %s348
    %v350 = vmul.f32 %v242, %v349
    %v351 = vadd.f32 %v347, %v350
    %s352 = sld [smem:[#allocation4 + $0x10]]
    %v353 = vstv %s352
    %v354 = vadd.f32 %v351, %v353
    %s355 = sld [smem:[#allocation2 + $0x24]]
    %v356 = vstv %s355
    %v357 = vmul.f32 %v214, %v356
    %s358 = sld [smem:[#allocation2 + $0x25]]
    %v359 = vstv %s358
    %v360 = vmul.f32 %v228, %v359
    %v361 = vadd.f32 %v357, %v360
    %s362 = sld [smem:[#allocation2 + $0x26]]
    %v363 = vstv %s362
    %v364 = vmul.f32 %v242, %v363
    %v365 = vadd.f32 %v361, %v364
    %s366 = sld [smem:[#allocation4 + $0x9]]
    %v367 = vstv %s366
    %v368 = vadd.f32 %v365, %v367
    %s369 = sld [smem:[#allocation2 + $0x27]]
    %v370 = vstv %s369
    %v371 = vmul.f32 %v214, %v370
    %s372 = sld [smem:[#allocation2 + $0x28]]
    %v373 = vstv %s372
    %v374 = vmul.f32 %v228, %v373
    %v375 = vadd.f32 %v371, %v374
    %s376 = sld [smem:[#allocation2 + $0x29]]
    %v377 = vstv %s376
    %v378 = vmul.f32 %v242, %v377
    %v379 = vadd.f32 %v375, %v378
    %s380 = sld [smem:[#allocation4 + $0xa]]
    %v381 = vstv %s380
    %v382 = vadd.f32 %v379, %v381
    %s383 = sld [smem:[#allocation2 + $0x2a]]
    %v384 = vstv %s383
    %v385 = vmul.f32 %v214, %v384
    %s386 = sld [smem:[#allocation2 + $0x2b]]
    %v387 = vstv %s386
    %v388 = vmul.f32 %v228, %v387
    %v389 = vadd.f32 %v385, %v388
    %s390 = sld [smem:[#allocation2 + $0x2c]]
    %v391 = vstv %s390
    %v392 = vmul.f32 %v242, %v391
    %v393 = vadd.f32 %v389, %v392
    %s394 = sld [smem:[#allocation4 + $0xb]]
    %v395 = vstv %s394
    %v396 = vadd.f32 %v393, %v395
    %v397 = vmul.f32 %v133, %v298
    %v398 = vmul.f32 %v150, %v312
    %v399 = vmul.f32 %v167, %v326
    %s400 = sld [smem:[#allocation2 + $0x2d]]
    %v401 = vstv %s400
    %v402 = vmul.f32 %v397, %v401
    %s403 = sld [smem:[#allocation2 + $0x2e]]
    %v404 = vstv %s403
    %v405 = vmul.f32 %v398, %v404
    %v406 = vadd.f32 %v402, %v405
    %s407 = sld [smem:[#allocation2 + $0x2f]]
    %v408 = vstv %s407
    %v409 = vmul.f32 %v399, %v408
    %v410 = vadd.f32 %v406, %v409
    %s411 = sld [smem:[#allocation2 + $0x30]]
    %v412 = vstv %s411
    %v413 = vmul.f32 %v397, %v412
    %s414 = sld [smem:[#allocation2 + $0x31]]
    %v415 = vstv %s414
    %v416 = vmul.f32 %v398, %v415
    %v417 = vadd.f32 %v413, %v416
    %s418 = sld [smem:[#allocation2 + $0x32]]
    %v419 = vstv %s418
    %v420 = vmul.f32 %v399, %v419
    %v421 = vadd.f32 %v417, %v420
    %s422 = sld [smem:[#allocation2 + $0x33]]
    %v423 = vstv %s422
    %v424 = vmul.f32 %v397, %v423
    %s425 = sld [smem:[#allocation2 + $0x34]]
    %v426 = vstv %s425
    %v427 = vmul.f32 %v398, %v426
    %v428 = vadd.f32 %v424, %v427
    %s429 = sld [smem:[#allocation2 + $0x35]]
    %v430 = vstv %s429
    %v431 = vmul.f32 %v399, %v430
    %v432 = vadd.f32 %v428, %v431
    %v433 = vadd.f32 %v368, %v410
    %v434 = vadd.f32 %v382, %v421
    %v435 = vadd.f32 %v396, %v432
    %v436 = vmul.f32 %v42, %v340
    %v437 = vmul.f32 %v43, %v354
    %s438 = sld [smem:[#allocation2 + $0x3f]]
    %v439 = vstv %s438
    %v440 = vmul.f32 %v436, %v439
    %s441 = sld [smem:[#allocation2 + $0x40]]
    %v442 = vstv %s441
    %v443 = vmul.f32 %v437, %v442
    %v444 = vadd.f32 %v440, %v443
    %s445 = sld [smem:[#allocation2 + $0x42]]
    %v446 = vstv %s445
    %v447 = vmul.f32 %v436, %v446
    %s448 = sld [smem:[#allocation2 + $0x43]]
    %v449 = vstv %s448
    %v450 = vmul.f32 %v437, %v449
    %v451 = vadd.f32 %v447, %v450
    %s452 = sld [smem:[#allocation2 + $0x45]]
    %v453 = vstv %s452
    %v454 = vmul.f32 %v436, %v453
    %s455 = sld [smem:[#allocation2 + $0x46]]
    %v456 = vstv %s455
    %v457 = vmul.f32 %v437, %v456
    %v458 = vadd.f32 %v454, %v457
    %v459 = vadd.f32 %v433, %v444
    %v460 = vadd.f32 %v434, %v451
    %v461 = vadd.f32 %v435, %v458
    %v462 = vmin.f32 %v459, 20.0
    %v463 = vmul.f32 %v462, 1.442695
    %v464 = vpow.pop %v463
    %vm465 = vcmp.gt.f32.partialorder %v459, 20.0
    %v466 = vadd.f32 %v464, 1.0
    %v467 = vlog2.pop %v466
    %v468 = vmul.f32 %v467, 0.6931472
    %v469 = vmul.f32 -0.5, %v464
    %v470 = vadd.f32 %v469, 1.0
    %v471 = vmul.f32 %v470, %v464
    %v472 = vand.u32 2147483647, %v464
    %vm473 = vcmp.lt.f32.partialorder %v472, 0.0004427343
    %v474 = vsel %vm473, %v471, %v468
    %v475 = vsel %vm465, %v459, %v474
    %v476 = vadd.f32 %v464, 1.0
    %v477 = vrcp.pop %v476
    %v478 = vmul.f32 %v464, %v477
    %v479 = vmin.f32 %v460, 20.0
    %v480 = vmul.f32 %v479, 1.442695
    %v481 = vpow.pop %v480
    %vm482 = vcmp.gt.f32.partialorder %v460, 20.0
    %v483 = vadd.f32 %v481, 1.0
    %v484 = vlog2.pop %v483
    %v485 = vmul.f32 %v484, 0.6931472
    %v486 = vmul.f32 -0.5, %v481
    %v487 = vadd.f32 %v486, 1.0
    %v488 = vmul.f32 %v487, %v481
    %v489 = vand.u32 2147483647, %v481
    %vm490 = vcmp.lt.f32.partialorder %v489, 0.0004427343
    %v491 = vsel %vm490, %v488, %v485
    %v492 = vsel %vm482, %v460, %v491
    %v493 = vadd.f32 %v481, 1.0
    %v494 = vrcp.pop %v493
    %v495 = vmul.f32 %v481, %v494
    %v496 = vmin.f32 %v461, 20.0
    %v497 = vmul.f32 %v496, 1.442695
    %v498 = vpow.pop %v497
    %vm499 = vcmp.gt.f32.partialorder %v461, 20.0
    %v500 = vadd.f32 %v498, 1.0
    %v501 = vlog2.pop %v500
    %v502 = vmul.f32 %v501, 0.6931472
    %v503 = vmul.f32 -0.5, %v498
    %v504 = vadd.f32 %v503, 1.0
    %v505 = vmul.f32 %v504, %v498
    %v506 = vand.u32 2147483647, %v498
    %vm507 = vcmp.lt.f32.partialorder %v506, 0.0004427343
    %v508 = vsel %vm507, %v505, %v502
    %v509 = vsel %vm499, %v461, %v508
    %v510 = vadd.f32 %v498, 1.0
    %v511 = vrcp.pop %v510
    %v512 = vmul.f32 %v498, %v511
    %s513 = sld [smem:[#allocation2 + $0x51]]
    %v514 = vstv %s513
    %v515 = vmul.f32 %v214, %v514
    %s516 = sld [smem:[#allocation2 + $0x52]]
    %v517 = vstv %s516
    %v518 = vmul.f32 %v228, %v517
    %v519 = vadd.f32 %v515, %v518
    %s520 = sld [smem:[#allocation2 + $0x53]]
    %v521 = vstv %s520
    %v522 = vmul.f32 %v242, %v521
    %v523 = vadd.f32 %v519, %v522
    %s524 = sld [smem:[#allocation4 + $0x12]]
    %v525 = vstv %s524
    %v526 = vadd.f32 %v523, %v525
    %s527 = sld [smem:[#allocation2 + $0x54]]
    %v528 = vstv %s527
    %v529 = vmul.f32 %v214, %v528
    %s530 = sld [smem:[#allocation2 + $0x55]]
    %v531 = vstv %s530
    %v532 = vmul.f32 %v228, %v531
    %v533 = vadd.f32 %v529, %v532
    %s534 = sld [smem:[#allocation2 + $0x56]]
    %v535 = vstv %s534
    %v536 = vmul.f32 %v242, %v535
    %v537 = vadd.f32 %v533, %v536
    %s538 = sld [smem:[#allocation4 + $0x13]]
    %v539 = vstv %s538
    %v540 = vadd.f32 %v537, %v539
    %s541 = sld [smem:[#allocation2 + $0x57]]
    %v542 = vstv %s541
    %v543 = vmul.f32 %v214, %v542
    %s544 = sld [smem:[#allocation2 + $0x58]]
    %v545 = vstv %s544
    %v546 = vmul.f32 %v228, %v545
    %v547 = vadd.f32 %v543, %v546
    %s548 = sld [smem:[#allocation2 + $0x59]]
    %v549 = vstv %s548
    %v550 = vmul.f32 %v242, %v549
    %v551 = vadd.f32 %v547, %v550
    %s552 = sld [smem:[#allocation4 + $0x14]]
    %v553 = vstv %s552
    %v554 = vadd.f32 %v551, %v553
    %vm555 = vcmp.gt.f32.partialorder %v526, 20.0
    %v556 = vmin.f32 %v526, 20.0
    %v557 = vmul.f32 %v556, 1.442695
    %v558 = vpow.pop %v557
    %v559 = vadd.f32 %v558, 1.0
    %v560 = vlog2.pop %v559
    %v561 = vmul.f32 %v560, 0.6931472
    %v562 = vmul.f32 -0.5, %v558
    %v563 = vadd.f32 %v562, 1.0
    %v564 = vmul.f32 %v563, %v558
    %v565 = vand.u32 2147483647, %v558
    %vm566 = vcmp.lt.f32.partialorder %v565, 0.0004427343
    %v567 = vsel %vm566, %v564, %v561
    %v568 = vsel %vm555, %v526, %v567
    %vm569 = vcmp.gt.f32.partialorder %v540, 20.0
    %v570 = vmin.f32 %v540, 20.0
    %v571 = vmul.f32 %v570, 1.442695
    %v572 = vpow.pop %v571
    %v573 = vadd.f32 %v572, 1.0
    %v574 = vlog2.pop %v573
    %v575 = vmul.f32 %v574, 0.6931472
    %v576 = vmul.f32 -0.5, %v572
    %v577 = vadd.f32 %v576, 1.0
    %v578 = vmul.f32 %v577, %v572
    %v579 = vand.u32 2147483647, %v572
    %vm580 = vcmp.lt.f32.partialorder %v579, 0.0004427343
    %v581 = vsel %vm580, %v578, %v575
    %v582 = vsel %vm569, %v540, %v581
    %vm583 = vcmp.gt.f32.partialorder %v554, 20.0
    %v584 = vmin.f32 %v554, 20.0
    %v585 = vmul.f32 %v584, 1.442695
    %v586 = vpow.pop %v585
    %v587 = vadd.f32 %v586, 1.0
    %v588 = vlog2.pop %v587
    %v589 = vmul.f32 %v588, 0.6931472
    %v590 = vmul.f32 -0.5, %v586
    %v591 = vadd.f32 %v590, 1.0
    %v592 = vmul.f32 %v591, %v586
    %v593 = vand.u32 2147483647, %v586
    %vm594 = vcmp.lt.f32.partialorder %v593, 0.0004427343
    %v595 = vsel %vm594, %v592, %v589
    %v596 = vsel %vm583, %v554, %v595
    %s597 = sld [smem:[#allocation2 + $0x6c]]
    %v598 = vstv %s597
    %v599 = vmul.f32 %v568, %v598
    %s600 = sld [smem:[#allocation2 + $0x6d]]
    %v601 = vstv %s600
    %v602 = vmul.f32 %v582, %v601
    %v603 = vadd.f32 %v599, %v602
    %s604 = sld [smem:[#allocation2 + $0x6e]]
    %v605 = vstv %s604
    %v606 = vmul.f32 %v596, %v605
    %v607 = vadd.f32 %v603, %v606
    %s608 = sld [smem:[#allocation4 + $0x18]]
    %v609 = vstv %s608
    %v610 = vadd.f32 %v607, %v609
    %s611 = sld [smem:[#allocation2 + $0x6f]]
    %v612 = vstv %s611
    %v613 = vmul.f32 %v568, %v612
    %s614 = sld [smem:[#allocation2 + $0x70]]
    %v615 = vstv %s614
    %v616 = vmul.f32 %v582, %v615
    %v617 = vadd.f32 %v613, %v616
    %s618 = sld [smem:[#allocation2 + $0x71]]
    %v619 = vstv %s618
    %v620 = vmul.f32 %v596, %v619
    %v621 = vadd.f32 %v617, %v620
    %s622 = sld [smem:[#allocation4 + $0x19]]
    %v623 = vstv %s622
    %v624 = vadd.f32 %v621, %v623
    %s625 = sld [smem:[#allocation2 + $0x72]]
    %v626 = vstv %s625
    %v627 = vmul.f32 %v568, %v626
    %s628 = sld [smem:[#allocation2 + $0x73]]
    %v629 = vstv %s628
    %v630 = vmul.f32 %v582, %v629
    %v631 = vadd.f32 %v627, %v630
    %s632 = sld [smem:[#allocation2 + $0x74]]
    %v633 = vstv %s632
    %v634 = vmul.f32 %v596, %v633
    %v635 = vadd.f32 %v631, %v634
    %s636 = sld [smem:[#allocation4 + $0x1a]]
    %v637 = vstv %s636
    %v638 = vadd.f32 %v635, %v637
    %vm639 = vcmp.gt.f32.partialorder %v610, 20.0
    %v640 = vmin.f32 %v610, 20.0
    %v641 = vmul.f32 %v640, 1.442695
    %v642 = vpow.pop %v641
    %v643 = vadd.f32 %v642, 1.0
    %v644 = vlog2.pop %v643
    %v645 = vmul.f32 %v644, 0.6931472
    %v646 = vmul.f32 -0.5, %v642
    %v647 = vadd.f32 %v646, 1.0
    %v648 = vmul.f32 %v647, %v642
    %v649 = vand.u32 2147483647, %v642
    %vm650 = vcmp.lt.f32.partialorder %v649, 0.0004427343
    %v651 = vsel %vm650, %v648, %v645
    %v652 = vsel %vm639, %v610, %v651
    %vm653 = vcmp.gt.f32.partialorder %v624, 20.0
    %v654 = vmin.f32 %v624, 20.0
    %v655 = vmul.f32 %v654, 1.442695
    %v656 = vpow.pop %v655
    %v657 = vadd.f32 %v656, 1.0
    %v658 = vlog2.pop %v657
    %v659 = vmul.f32 %v658, 0.6931472
    %v660 = vmul.f32 -0.5, %v656
    %v661 = vadd.f32 %v660, 1.0
    %v662 = vmul.f32 %v661, %v656
    %v663 = vand.u32 2147483647, %v656
    %vm664 = vcmp.lt.f32.partialorder %v663, 0.0004427343
    %v665 = vsel %vm664, %v662, %v659
    %v666 = vsel %vm653, %v624, %v665
    %vm667 = vcmp.gt.f32.partialorder %v638, 20.0
    %v668 = vmin.f32 %v638, 20.0
    %v669 = vmul.f32 %v668, 1.442695
    %v670 = vpow.pop %v669
    %v671 = vadd.f32 %v670, 1.0
    %v672 = vlog2.pop %v671
    %v673 = vmul.f32 %v672, 0.6931472
    %v674 = vmul.f32 -0.5, %v670
    %v675 = vadd.f32 %v674, 1.0
    %v676 = vmul.f32 %v675, %v670
    %v677 = vand.u32 2147483647, %v670
    %vm678 = vcmp.lt.f32.partialorder %v677, 0.0004427343
    %v679 = vsel %vm678, %v676, %v673
    %v680 = vsel %vm667, %v638, %v679
    %s681 = sld [smem:[#allocation2 + $0x7e]]
    %v682 = vstv %s681
    %v683 = vmul.f32 %v568, %v682
    %s684 = sld [smem:[#allocation2 + $0x7f]]
    %v685 = vstv %s684
    %v686 = vmul.f32 %v582, %v685
    %v687 = vadd.f32 %v683, %v686
    %s688 = sld [smem:[#allocation2 + $0x80]]
    %v689 = vstv %s688
    %v690 = vmul.f32 %v596, %v689
    %v691 = vadd.f32 %v687, %v690
    %s692 = sld [smem:[#allocation4 + $0x1b]]
    %v693 = vstv %s692
    %v694 = vadd.f32 %v691, %v693
    %s695 = sld [smem:[#allocation2 + $0x81]]
    %v696 = vstv %s695
    %v697 = vmul.f32 %v568, %v696
    %s698 = sld [smem:[#allocation2 + $0x82]]
    %v699 = vstv %s698
    %v700 = vmul.f32 %v582, %v699
    %v701 = vadd.f32 %v697, %v700
    %s702 = sld [smem:[#allocation2 + $0x83]]
    %v703 = vstv %s702
    %v704 = vmul.f32 %v596, %v703
    %v705 = vadd.f32 %v701, %v704
    %s706 = sld [smem:[#allocation4 + $0x1c]]
    %v707 = vstv %s706
    %v708 = vadd.f32 %v705, %v707
    %s709 = sld [smem:[#allocation2 + $0x5a]]
    %v710 = vstv %s709
    %v711 = vmul.f32 %v568, %v710
    %s712 = sld [smem:[#allocation2 + $0x5b]]
    %v713 = vstv %s712
    %v714 = vmul.f32 %v582, %v713
    %v715 = vadd.f32 %v711, %v714
    %s716 = sld [smem:[#allocation2 + $0x5c]]
    %v717 = vstv %s716
    %v718 = vmul.f32 %v596, %v717
    %v719 = vadd.f32 %v715, %v718
    %s720 = sld [smem:[#allocation4 + $0x15]]
    %v721 = vstv %s720
    %v722 = vadd.f32 %v719, %v721
    %s723 = sld [smem:[#allocation2 + $0x5d]]
    %v724 = vstv %s723
    %v725 = vmul.f32 %v568, %v724
    %s726 = sld [smem:[#allocation2 + $0x5e]]
    %v727 = vstv %s726
    %v728 = vmul.f32 %v582, %v727
    %v729 = vadd.f32 %v725, %v728
    %s730 = sld [smem:[#allocation2 + $0x5f]]
    %v731 = vstv %s730
    %v732 = vmul.f32 %v596, %v731
    %v733 = vadd.f32 %v729, %v732
    %s734 = sld [smem:[#allocation4 + $0x16]]
    %v735 = vstv %s734
    %v736 = vadd.f32 %v733, %v735
    %s737 = sld [smem:[#allocation2 + $0x60]]
    %v738 = vstv %s737
    %v739 = vmul.f32 %v568, %v738
    %s740 = sld [smem:[#allocation2 + $0x61]]
    %v741 = vstv %s740
    %v742 = vmul.f32 %v582, %v741
    %v743 = vadd.f32 %v739, %v742
    %s744 = sld [smem:[#allocation2 + $0x62]]
    %v745 = vstv %s744
    %v746 = vmul.f32 %v596, %v745
    %v747 = vadd.f32 %v743, %v746
    %s748 = sld [smem:[#allocation4 + $0x17]]
    %v749 = vstv %s748
    %v750 = vadd.f32 %v747, %v749
    %v751 = vmul.f32 %v475, %v652
    %v752 = vmul.f32 %v492, %v666
    %v753 = vmul.f32 %v509, %v680
    %s754 = sld [smem:[#allocation2 + $0x63]]
    %v755 = vstv %s754
    %v756 = vmul.f32 %v751, %v755
    %s757 = sld [smem:[#allocation2 + $0x64]]
    %v758 = vstv %s757
    %v759 = vmul.f32 %v752, %v758
    %v760 = vadd.f32 %v756, %v759
    %s761 = sld [smem:[#allocation2 + $0x65]]
    %v762 = vstv %s761
    %v763 = vmul.f32 %v753, %v762
    %v764 = vadd.f32 %v760, %v763
    %s765 = sld [smem:[#allocation2 + $0x66]]
    %v766 = vstv %s765
    %v767 = vmul.f32 %v751, %v766
    %s768 = sld [smem:[#allocation2 + $0x67]]
    %v769 = vstv %s768
    %v770 = vmul.f32 %v752, %v769
    %v771 = vadd.f32 %v767, %v770
    %s772 = sld [smem:[#allocation2 + $0x68]]
    %v773 = vstv %s772
    %v774 = vmul.f32 %v753, %v773
    %v775 = vadd.f32 %v771, %v774
    %s776 = sld [smem:[#allocation2 + $0x69]]
    %v777 = vstv %s776
    %v778 = vmul.f32 %v751, %v777
    %s779 = sld [smem:[#allocation2 + $0x6a]]
    %v780 = vstv %s779
    %v781 = vmul.f32 %v752, %v780
    %v782 = vadd.f32 %v778, %v781
    %s783 = sld [smem:[#allocation2 + $0x6b]]
    %v784 = vstv %s783
    %v785 = vmul.f32 %v753, %v784
    %v786 = vadd.f32 %v782, %v785
    %v787 = vadd.f32 %v722, %v764
    %v788 = vadd.f32 %v736, %v775
    %v789 = vadd.f32 %v750, %v786
    %v790 = vmul.f32 %v42, %v694
    %v791 = vmul.f32 %v43, %v708
    %s792 = sld [smem:[#allocation2 + $0x75]]
    %v793 = vstv %s792
    %v794 = vmul.f32 %v790, %v793
    %s795 = sld [smem:[#allocation2 + $0x76]]
    %v796 = vstv %s795
    %v797 = vmul.f32 %v791, %v796
    %v798 = vadd.f32 %v794, %v797
    %s799 = sld [smem:[#allocation2 + $0x78]]
    %v800 = vstv %s799
    %v801 = vmul.f32 %v790, %v800
    %s802 = sld [smem:[#allocation2 + $0x79]]
    %v803 = vstv %s802
    %v804 = vmul.f32 %v791, %v803
    %v805 = vadd.f32 %v801, %v804
    %s806 = sld [smem:[#allocation2 + $0x7b]]
    %v807 = vstv %s806
    %v808 = vmul.f32 %v790, %v807
    %s809 = sld [smem:[#allocation2 + $0x7c]]
    %v810 = vstv %s809
    %v811 = vmul.f32 %v791, %v810
    %v812 = vadd.f32 %v808, %v811
    %v813 = vadd.f32 %v787, %v798
    %v814 = vadd.f32 %v788, %v805
    %v815 = vadd.f32 %v789, %v812
    %v816 = vmin.f32 %v813, 20.0
    %v817 = vmul.f32 %v816, 1.442695
    %v818 = vpow.pop %v817
    %vm819 = vcmp.gt.f32.partialorder %v813, 20.0
    %v820 = vadd.f32 %v818, 1.0
    %v821 = vlog2.pop %v820
    %v822 = vmul.f32 %v821, 0.6931472
    %v823 = vmul.f32 -0.5, %v818
    %v824 = vadd.f32 %v823, 1.0
    %v825 = vmul.f32 %v824, %v818
    %v826 = vand.u32 2147483647, %v818
    %vm827 = vcmp.lt.f32.partialorder %v826, 0.0004427343
    %v828 = vsel %vm827, %v825, %v822
    %v829 = vsel %vm819, %v813, %v828
    %v830 = vadd.f32 %v818, 1.0
    %v831 = vrcp.pop %v830
    %v832 = vmul.f32 %v818, %v831
    %v833 = vmin.f32 %v814, 20.0
    %v834 = vmul.f32 %v833, 1.442695
    %v835 = vpow.pop %v834
    %vm836 = vcmp.gt.f32.partialorder %v814, 20.0
    %v837 = vadd.f32 %v835, 1.0
    %v838 = vlog2.pop %v837
    %v839 = vmul.f32 %v838, 0.6931472
    %v840 = vmul.f32 -0.5, %v835
    %v841 = vadd.f32 %v840, 1.0
    %v842 = vmul.f32 %v841, %v835
    %v843 = vand.u32 2147483647, %v835
    %vm844 = vcmp.lt.f32.partialorder %v843, 0.0004427343
    %v845 = vsel %vm844, %v842, %v839
    %v846 = vsel %vm836, %v814, %v845
    %v847 = vadd.f32 %v835, 1.0
    %v848 = vrcp.pop %v847
    %v849 = vmul.f32 %v835, %v848
    %v850 = vmin.f32 %v815, 20.0
    %v851 = vmul.f32 %v850, 1.442695
    %v852 = vpow.pop %v851
    %vm853 = vcmp.gt.f32.partialorder %v815, 20.0
    %v854 = vadd.f32 %v852, 1.0
    %v855 = vlog2.pop %v854
    %v856 = vmul.f32 %v855, 0.6931472
    %v857 = vmul.f32 -0.5, %v852
    %v858 = vadd.f32 %v857, 1.0
    %v859 = vmul.f32 %v858, %v852
    %v860 = vand.u32 2147483647, %v852
    %vm861 = vcmp.lt.f32.partialorder %v860, 0.0004427343
    %v862 = vsel %vm861, %v859, %v856
    %v863 = vsel %vm853, %v815, %v862
    %v864 = vadd.f32 %v852, 1.0
    %v865 = vrcp.pop %v864
    %v866 = vmul.f32 %v852, %v865
    %s867 = sld [smem:[#allocation2 + $0x87]]
    %v868 = vstv %s867
    %v869 = vmul.f32 %v568, %v868
    %s870 = sld [smem:[#allocation2 + $0x88]]
    %v871 = vstv %s870
    %v872 = vmul.f32 %v582, %v871
    %v873 = vadd.f32 %v869, %v872
    %s874 = sld [smem:[#allocation2 + $0x89]]
    %v875 = vstv %s874
    %v876 = vmul.f32 %v596, %v875
    %v877 = vadd.f32 %v873, %v876
    %s878 = sld [smem:[#allocation4 + $0x1e]]
    %v879 = vstv %s878
    %v880 = vadd.f32 %v877, %v879
    %s881 = sld [smem:[#allocation2 + $0x8a]]
    %v882 = vstv %s881
    %v883 = vmul.f32 %v568, %v882
    %s884 = sld [smem:[#allocation2 + $0x8b]]
    %v885 = vstv %s884
    %v886 = vmul.f32 %v582, %v885
    %v887 = vadd.f32 %v883, %v886
    %s888 = sld [smem:[#allocation2 + $0x8c]]
    %v889 = vstv %s888
    %v890 = vmul.f32 %v596, %v889
    %v891 = vadd.f32 %v887, %v890
    %s892 = sld [smem:[#allocation4 + $0x1f]]
    %v893 = vstv %s892
    %v894 = vadd.f32 %v891, %v893
    %s895 = sld [smem:[#allocation2 + $0x8d]]
    %v896 = vstv %s895
    %v897 = vmul.f32 %v568, %v896
    %s898 = sld [smem:[#allocation2 + $0x8e]]
    %v899 = vstv %s898
    %v900 = vmul.f32 %v582, %v899
    %v901 = vadd.f32 %v897, %v900
    %s902 = sld [smem:[#allocation2 + $0x8f]]
    %v903 = vstv %s902
    %v904 = vmul.f32 %v596, %v903
    %v905 = vadd.f32 %v901, %v904
    %s906 = sld [smem:[#allocation4 + $0x20]]
    %v907 = vstv %s906
    %v908 = vadd.f32 %v905, %v907
    %vm909 = vcmp.gt.f32.partialorder %v880, 20.0
    %v910 = vmin.f32 %v880, 20.0
    %v911 = vmul.f32 %v910, 1.442695
    %v912 = vpow.pop %v911
    %v913 = vadd.f32 %v912, 1.0
    %v914 = vlog2.pop %v913
    %v915 = vmul.f32 %v914, 0.6931472
    %v916 = vmul.f32 -0.5, %v912
    %v917 = vadd.f32 %v916, 1.0
    %v918 = vmul.f32 %v917, %v912
    %v919 = vand.u32 2147483647, %v912
    %vm920 = vcmp.lt.f32.partialorder %v919, 0.0004427343
    %v921 = vsel %vm920, %v918, %v915
    %v922 = vsel %vm909, %v880, %v921
    %vm923 = vcmp.gt.f32.partialorder %v894, 20.0
    %v924 = vmin.f32 %v894, 20.0
    %v925 = vmul.f32 %v924, 1.442695
    %v926 = vpow.pop %v925
    %v927 = vadd.f32 %v926, 1.0
    %v928 = vlog2.pop %v927
    %v929 = vmul.f32 %v928, 0.6931472
    %v930 = vmul.f32 -0.5, %v926
    %v931 = vadd.f32 %v930, 1.0
    %v932 = vmul.f32 %v931, %v926
    %v933 = vand.u32 2147483647, %v926
    %vm934 = vcmp.lt.f32.partialorder %v933, 0.0004427343
    %v935 = vsel %vm934, %v932, %v929
    %v936 = vsel %vm923, %v894, %v935
    %vm937 = vcmp.gt.f32.partialorder %v908, 20.0
    %v938 = vmin.f32 %v908, 20.0
    %v939 = vmul.f32 %v938, 1.442695
    %v940 = vpow.pop %v939
    %v941 = vadd.f32 %v940, 1.0
    %v942 = vlog2.pop %v941
    %v943 = vmul.f32 %v942, 0.6931472
    %v944 = vmul.f32 -0.5, %v940
    %v945 = vadd.f32 %v944, 1.0
    %v946 = vmul.f32 %v945, %v940
    %v947 = vand.u32 2147483647, %v940
    %vm948 = vcmp.lt.f32.partialorder %v947, 0.0004427343
    %v949 = vsel %vm948, %v946, %v943
    %v950 = vsel %vm937, %v908, %v949
    %s951 = sld [smem:[#allocation2 + $0xa2]]
    %v952 = vstv %s951
    %v953 = vmul.f32 %v922, %v952
    %s954 = sld [smem:[#allocation2 + $0xa3]]
    %v955 = vstv %s954
    %v956 = vmul.f32 %v936, %v955
    %v957 = vadd.f32 %v953, %v956
    %s958 = sld [smem:[#allocation2 + $0xa4]]
    %v959 = vstv %s958
    %v960 = vmul.f32 %v950, %v959
    %v961 = vadd.f32 %v957, %v960
    %s962 = sld [smem:[#allocation4 + $0x24]]
    %v963 = vstv %s962
    %v964 = vadd.f32 %v961, %v963
    %s965 = sld [smem:[#allocation2 + $0xa5]]
    %v966 = vstv %s965
    %v967 = vmul.f32 %v922, %v966
    %s968 = sld [smem:[#allocation2 + $0xa6]]
    %v969 = vstv %s968
    %v970 = vmul.f32 %v936, %v969
    %v971 = vadd.f32 %v967, %v970
    %s972 = sld [smem:[#allocation2 + $0xa7]]
    %v973 = vstv %s972
    %v974 = vmul.f32 %v950, %v973
    %v975 = vadd.f32 %v971, %v974
    %s976 = sld [smem:[#allocation4 + $0x25]]
    %v977 = vstv %s976
    %v978 = vadd.f32 %v975, %v977
    %s979 = sld [smem:[#allocation2 + $0xa8]]
    %v980 = vstv %s979
    %v981 = vmul.f32 %v922, %v980
    %s982 = sld [smem:[#allocation2 + $0xa9]]
    %v983 = vstv %s982
    %v984 = vmul.f32 %v936, %v983
    %v985 = vadd.f32 %v981, %v984
    %s986 = sld [smem:[#allocation2 + $0xaa]]
    %v987 = vstv %s986
    %v988 = vmul.f32 %v950, %v987
    %v989 = vadd.f32 %v985, %v988
    %s990 = sld [smem:[#allocation4 + $0x26]]
    %v991 = vstv %s990
    %v992 = vadd.f32 %v989, %v991
    %vm993 = vcmp.gt.f32.partialorder %v964, 20.0
    %v994 = vmin.f32 %v964, 20.0
    %v995 = vmul.f32 %v994, 1.442695
    %v996 = vpow.pop %v995
    %v997 = vadd.f32 %v996, 1.0
    %v998 = vlog2.pop %v997
    %v999 = vmul.f32 %v998, 0.6931472
    %v1000 = vmul.f32 -0.5, %v996
    %v1001 = vadd.f32 %v1000, 1.0
    %v1002 = vmul.f32 %v1001, %v996
    %v1003 = vand.u32 2147483647, %v996
    %vm1004 = vcmp.lt.f32.partialorder %v1003, 0.0004427343
    %v1005 = vsel %vm1004, %v1002, %v999
    %v1006 = vsel %vm993, %v964, %v1005
    %vm1007 = vcmp.gt.f32.partialorder %v978, 20.0
    %v1008 = vmin.f32 %v978, 20.0
    %v1009 = vmul.f32 %v1008, 1.442695
    %v1010 = vpow.pop %v1009
    %v1011 = vadd.f32 %v1010, 1.0
    %v1012 = vlog2.pop %v1011
    %v1013 = vmul.f32 %v1012, 0.6931472
    %v1014 = vmul.f32 -0.5, %v1010
    %v1015 = vadd.f32 %v1014, 1.0
    %v1016 = vmul.f32 %v1015, %v1010
    %v1017 = vand.u32 2147483647, %v1010
    %vm1018 = vcmp.lt.f32.partialorder %v1017, 0.0004427343
    %v1019 = vsel %vm1018, %v1016, %v1013
    %v1020 = vsel %vm1007, %v978, %v1019
    %vm1021 = vcmp.gt.f32.partialorder %v992, 20.0
    %v1022 = vmin.f32 %v992, 20.0
    %v1023 = vmul.f32 %v1022, 1.442695
    %v1024 = vpow.pop %v1023
    %v1025 = vadd.f32 %v1024, 1.0
    %v1026 = vlog2.pop %v1025
    %v1027 = vmul.f32 %v1026, 0.6931472
    %v1028 = vmul.f32 -0.5, %v1024
    %v1029 = vadd.f32 %v1028, 1.0
    %v1030 = vmul.f32 %v1029, %v1024
    %v1031 = vand.u32 2147483647, %v1024
    %vm1032 = vcmp.lt.f32.partialorder %v1031, 0.0004427343
    %v1033 = vsel %vm1032, %v1030, %v1027
    %v1034 = vsel %vm1021, %v992, %v1033
    %s1035 = sld [smem:[#allocation2 + $0xb4]]
    %v1036 = vstv %s1035
    %v1037 = vmul.f32 %v922, %v1036
    %s1038 = sld [smem:[#allocation2 + $0xb5]]
    %v1039 = vstv %s1038
    %v1040 = vmul.f32 %v936, %v1039
    %v1041 = vadd.f32 %v1037, %v1040
    %s1042 = sld [smem:[#allocation2 + $0xb6]]
    %v1043 = vstv %s1042
    %v1044 = vmul.f32 %v950, %v1043
    %v1045 = vadd.f32 %v1041, %v1044
    %s1046 = sld [smem:[#allocation4 + $0x27]]
    %v1047 = vstv %s1046
    %v1048 = vadd.f32 %v1045, %v1047
    %s1049 = sld [smem:[#allocation2 + $0xb7]]
    %v1050 = vstv %s1049
    %v1051 = vmul.f32 %v922, %v1050
    %s1052 = sld [smem:[#allocation2 + $0xb8]]
    %v1053 = vstv %s1052
    %v1054 = vmul.f32 %v936, %v1053
    %v1055 = vadd.f32 %v1051, %v1054
    %s1056 = sld [smem:[#allocation2 + $0xb9]]
    %v1057 = vstv %s1056
    %v1058 = vmul.f32 %v950, %v1057
    %v1059 = vadd.f32 %v1055, %v1058
    %s1060 = sld [smem:[#allocation4 + $0x28]]
    %v1061 = vstv %s1060
    %v1062 = vadd.f32 %v1059, %v1061
    %s1063 = sld [smem:[#allocation2 + $0x90]]
    %v1064 = vstv %s1063
    %v1065 = vmul.f32 %v922, %v1064
    %s1066 = sld [smem:[#allocation2 + $0x91]]
    %v1067 = vstv %s1066
    %v1068 = vmul.f32 %v936, %v1067
    %v1069 = vadd.f32 %v1065, %v1068
    %s1070 = sld [smem:[#allocation2 + $0x92]]
    %v1071 = vstv %s1070
    %v1072 = vmul.f32 %v950, %v1071
    %v1073 = vadd.f32 %v1069, %v1072
    %s1074 = sld [smem:[#allocation4 + $0x21]]
    %v1075 = vstv %s1074
    %v1076 = vadd.f32 %v1073, %v1075
    %v1077 = vmul.f32 %v829, %v1006
    %v1078 = vmul.f32 %v846, %v1020
    %v1079 = vmul.f32 %v863, %v1034
    %s1080 = sld [smem:[#allocation2 + $0x99]]
    %v1081 = vstv %s1080
    %v1082 = vmul.f32 %v1077, %v1081
    %s1083 = sld [smem:[#allocation2 + $0x9a]]
    %v1084 = vstv %s1083
    %v1085 = vmul.f32 %v1078, %v1084
    %v1086 = vadd.f32 %v1082, %v1085
    %s1087 = sld [smem:[#allocation2 + $0x9b]]
    %v1088 = vstv %s1087
    %v1089 = vmul.f32 %v1079, %v1088
    %v1090 = vadd.f32 %v1086, %v1089
    %v1091 = vadd.f32 %v1076, %v1090
    %v1092 = vmul.f32 %v42, %v1048
    %v1093 = vmul.f32 %v43, %v1062
    %s1094 = sld [smem:[#allocation2 + $0xab]]
    %v1095 = vstv %s1094
    %v1096 = vmul.f32 %v1092, %v1095
    %s1097 = sld [smem:[#allocation2 + $0xac]]
    %v1098 = vstv %s1097
    %v1099 = vmul.f32 %v1093, %v1098
    %v1100 = vadd.f32 %v1096, %v1099
    %v1101 = vadd.f32 %v1091, %v1100
    %v1102 = vmin.f32 %v1101, 20.0
    %v1103 = vmul.f32 %v1102, 1.442695
    %v1104 = vpow.pop %v1103
    %v1105 = vadd.f32 %v1104, 1.0
    %v1106 = vrcp.pop %v1105
    %v1107 = vmul.f32 %v1104, %v1106
    %v1108 = vmul.f32 %v1107, %v1095
    %v1109 = vmul.f32 %v1107, %v1098
    %v1110 = vmul.f32 %v1108, %v1048
    %v1111 = vmul.f32 %v1109, %v1062
    %v1112 = vmul.f32 %v1107, %v1081
    %v1113 = vmul.f32 %v1107, %v1084
    %v1114 = vmul.f32 %v1107, %v1088
    %v1115 = vmul.f32 %v1112, %v1006
    %v1116 = vmul.f32 %v1113, %v1020
    %v1117 = vmul.f32 %v1114, %v1034
    %v1118 = vmul.f32 %v1115, %v832
    %v1119 = vmul.f32 %v1116, %v849
    %v1120 = vmul.f32 %v1117, %v866
    %v1121 = vmul.f32 %v1118, %v793
    %v1122 = vmul.f32 %v1119, %v800
    %v1123 = vadd.f32 %v1121, %v1122
    %v1124 = vmul.f32 %v1120, %v807
    %v1125 = vadd.f32 %v1123, %v1124
    %v1126 = vmul.f32 %v1118, %v796
    %v1127 = vmul.f32 %v1119, %v803
    %v1128 = vadd.f32 %v1126, %v1127
    %v1129 = vmul.f32 %v1120, %v810
    %v1130 = vadd.f32 %v1128, %v1129
    %v1131 = vmul.f32 %v1125, %v694
    %v1132 = vmul.f32 %v1130, %v708
    %v1133 = vadd.f32 %v1110, %v1131
    %v1134 = vadd.f32 %v1111, %v1132
    %v1135 = vmul.f32 %v1118, %v755
    %v1136 = vmul.f32 %v1119, %v766
    %v1137 = vadd.f32 %v1135, %v1136
    %v1138 = vmul.f32 %v1120, %v777
    %v1139 = vadd.f32 %v1137, %v1138
    %v1140 = vmul.f32 %v1118, %v758
    %v1141 = vmul.f32 %v1119, %v769
    %v1142 = vadd.f32 %v1140, %v1141
    %v1143 = vmul.f32 %v1120, %v780
    %v1144 = vadd.f32 %v1142, %v1143
    %v1145 = vmul.f32 %v1118, %v762
    %v1146 = vmul.f32 %v1119, %v773
    %v1147 = vadd.f32 %v1145, %v1146
    %v1148 = vmul.f32 %v1120, %v784
    %v1149 = vadd.f32 %v1147, %v1148
    %v1150 = vmul.f32 %v1139, %v652
    %v1151 = vmul.f32 %v1144, %v666
    %v1152 = vmul.f32 %v1149, %v680
    %v1153 = vmul.f32 %v1150, %v478
    %v1154 = vmul.f32 %v1151, %v495
    %v1155 = vmul.f32 %v1152, %v512
    %v1156 = vmul.f32 %v1153, %v439
    %v1157 = vmul.f32 %v1154, %v446
    %v1158 = vadd.f32 %v1156, %v1157
    %v1159 = vmul.f32 %v1155, %v453
    %v1160 = vadd.f32 %v1158, %v1159
    %v1161 = vmul.f32 %v1153, %v442
    %v1162 = vmul.f32 %v1154, %v449
    %v1163 = vadd.f32 %v1161, %v1162
    %v1164 = vmul.f32 %v1155, %v456
    %v1165 = vadd.f32 %v1163, %v1164
    %v1166 = vmul.f32 %v1160, %v340
    %v1167 = vmul.f32 %v1165, %v354
    %v1168 = vadd.f32 %v1133, %v1166
    %v1169 = vadd.f32 %v1134, %v1167
    %v1170 = vmul.f32 %v1153, %v401
    %v1171 = vmul.f32 %v1154, %v412
    %v1172 = vadd.f32 %v1170, %v1171
    %v1173 = vmul.f32 %v1155, %v423
    %v1174 = vadd.f32 %v1172, %v1173
    %v1175 = vmul.f32 %v1153, %v404
    %v1176 = vmul.f32 %v1154, %v415
    %v1177 = vadd.f32 %v1175, %v1176
    %v1178 = vmul.f32 %v1155, %v426
    %v1179 = vadd.f32 %v1177, %v1178
    %v1180 = vmul.f32 %v1153, %v408
    %v1181 = vmul.f32 %v1154, %v419
    %v1182 = vadd.f32 %v1180, %v1181
    %v1183 = vmul.f32 %v1155, %v430
    %v1184 = vadd.f32 %v1182, %v1183
    %v1185 = vmul.f32 %v1174, %v298
    %v1186 = vmul.f32 %v1179, %v312
    %v1187 = vmul.f32 %v1184, %v326
    %v1188 = vmul.f32 %v1185, %v136
    %v1189 = vmul.f32 %v1186, %v153
    %v1190 = vmul.f32 %v1187, %v170
    %v1191 = vmul.f32 %v1188, %v97
    %v1192 = vmul.f32 %v1189, %v104
    %v1193 = vadd.f32 %v1191, %v1192
    %v1194 = vmul.f32 %v1190, %v111
    %v1195 = vadd.f32 %v1193, %v1194
    %v1196 = vmul.f32 %v1188, %v100
    %v1197 = vmul.f32 %v1189, %v107
    %v1198 = vadd.f32 %v1196, %v1197
    %v1199 = vmul.f32 %v1190, %v114
    %v1200 = vadd.f32 %v1198, %v1199
    %v1201 = vmul.f32 %v1195, %v53
    %v1202 = vmul.f32 %v1200, %v63
    %v1203 = vadd.f32 %v1168, %v1201
    %v1204 = vadd.f32 %v1169, %v1202
    %1205 = vst [vmem:[%s3] sm:$0xff] %v1203
    %s1206 = scalar_lea.vmem %s3, 8
    %1207 = vst [vmem:[%s1206] sm:$0xff] %v1204
    // Predicated region
    $region22: #{gradient_dynamics.1} parent=1 // pred_check
      _
    $region23: #{gradient_dynamics.1} parent=1 // pred_check_branch
      %1209 = sbr.rel (0) target = $region25
    $region24: #{gradient_dynamics.1} parent=1 // pred_region
      _
    $region25: #{gradient_dynamics.1} parent=1 // pred_fallthru
      _
    // Predicated region
    $region26: #{gradient_dynamics.1} parent=1 // pred_check
      _
    $region27: #{gradient_dynamics.1} parent=1 // pred_check_branch
      %1211 = sbr.rel (0) target = $region29
    $region28: #{gradient_dynamics.1} parent=1 // pred_region
      _
    $region29: #{gradient_dynamics.1} parent=1 // pred_fallthru
      _
    %1212 = vsyncpa [#allocation3], 1
    %1213 = vsyncpa [#allocation5], 1

</llo_original>
